<compile_context>
chip_gen: v6e
topology: v6e:2x2x1
jax: 0.10.0
libtpu: 0.0.40
codegen_flags: <defaults>
</compile_context>

<pallas_src>
import functools
import math

import jax
import jax.numpy as jnp
from jax.experimental import pallas as pl
from jax.experimental.pallas import tpu as pltpu

# --------------------------------------------------------------------------------------
# constants (mirroring FSIM_base.__init__)
# --------------------------------------------------------------------------------------
NSCALE = 4
NORIENT = 4
K_NOISE = 2.0
EPSILON = 1e-4
PI = math.pi
MIN_WAVELENGTH = 6
MULT = 2
SIGMA_ONF = 0.55
DTHETA_ON_SIGMA = 1.2
THETA_SIGMA = PI / NORIENT / DTHETA_ON_SIGMA
DEN = 2.0 * math.log(SIGMA_ONF) ** 2
T1 = 0.85
T2 = 160.0


def _parallel(n):
    return pltpu.CompilerParams(dimension_semantics=("parallel",) * n)


# --------------------------------------------------------------------------------------
# Pallas kernels
# --------------------------------------------------------------------------------------
def _y_pool_kernel(img_ref, y_ref, *, F, H, W):
    # img_ref: (1, 3, H, W) ; y_ref: (1, 1, H//F, W//F)
    r = img_ref[0, 0]
    g = img_ref[0, 1]
    b = img_ref[0, 2]
    y = 0.299 * r + 0.587 * g + 0.114 * b
    if F > 1:
        # Fused FxF average pool (writes the pooled Y straight from VMEM instead of a
        # separate lax.reduce_window pass); H, W are multiples of F on this path.
        y = y.reshape(H // F, F, W // F, F)
        y = jnp.sum(jnp.sum(y, axis=3), axis=1) * (1.0 / float(F * F))
    y_ref[0, 0] = y


def _grad_kernel(ypad_ref, out_ref, *, H, W):
    # ypad_ref: (1, 1, H+2, W+2) zero-padded luminance; out_ref: (1, 1, H, W)
    # Separable Scharr-like filter:  dx = outer([3,10,3], [-1,0,1]) / 16,
    #                                dy = outer([-1,0,1], [3,10,3]) / 16
    # (global sign is irrelevant for the gradient magnitude).
    t0 = ypad_ref[0, 0, 0:H, :]          # (H, W+2)
    t1 = ypad_ref[0, 0, 1:H + 1, :]
    t2 = ypad_ref[0, 0, 2:H + 2, :]
    sm = 3.0 * (t0 + t2) + 10.0 * t1     # row-smoothed   (H, W+2)
    df = t2 - t0                         # row-differenced (H, W+2)
    ix = (sm[:, 2:W + 2] - sm[:, 0:W]) * (1.0 / 16.0)
    iy = (3.0 * (df[:, 0:W] + df[:, 2:W + 2]) + 10.0 * df[:, 1:W + 1]) * (1.0 / 16.0)
    out_ref[0, 0] = jnp.sqrt(ix * ix + iy * iy)


def _phase_energy_kernel(e_ref, o_ref, sum_an_ref, energy_ref, *, nscale):
    # e_ref / o_ref: (1, nscale, 1, H, W) real / imag log-Gabor responses for one
    # (batch, orientation) pair.  Outputs: (1, 1, H, W).
    e0 = e_ref[0, 0, 0]
    o0 = o_ref[0, 0, 0]
    sum_an = jnp.sqrt(e0 * e0 + o0 * o0)
    sum_e = e0
    sum_o = o0
    for s in range(1, nscale):
        e = e_ref[0, s, 0]
        o = o_ref[0, s, 0]
        sum_an = sum_an + jnp.sqrt(e * e + o * o)
        sum_e = sum_e + e
        sum_o = sum_o + o
    # 1/XEnergy on the EUP (approx reciprocal) -- frees the VALU slot.
    inv_xenergy = pl.reciprocal(
        jnp.sqrt(sum_e * sum_e + sum_o * sum_o) + EPSILON, approx=True)
    mean_e = sum_e * inv_xenergy
    mean_o = sum_o * inv_xenergy
    energy = jnp.zeros_like(mean_e)
    for s in range(nscale):
        # Re-read the scale tiles from the VMEM-resident block instead of keeping
        # 2*nscale full tiles live across both loops (avoids vreg spills).
        e = e_ref[0, s, 0]
        o = o_ref[0, s, 0]
        energy = energy + e * mean_e + o * mean_o - jnp.abs(e * mean_o - o * mean_e)
    sum_an_ref[0, 0] = sum_an
    energy_ref[0, 0] = energy


def _fsim_kernel(pc1_ref, pc2_ref, g1_ref, g2_ref, sim_ref, pcm_ref):
    # pc*/g*: (1, R, C) lane-dense tiles; outputs: (1, 1, 128) per-batch partial sums.
    pc1 = pc1_ref[0]
    pc2 = pc2_ref[0]
    g1 = g1_ref[0]
    g2 = g2_ref[0]
    pcsim = (2.0 * pc1 * pc2 + T1) * pl.reciprocal(pc1 * pc1 + pc2 * pc2 + T1,
                                                   approx=True)
    gsim = (2.0 * g1 * g2 + T2) * pl.reciprocal(g1 * g1 + g2 * g2 + T2, approx=True)
    pcm = jnp.where(pc1 > pc2, pc1, pc2)
    sim = gsim * pcsim * pcm
    sim_ref[...] = jnp.broadcast_to(jnp.sum(sim), sim_ref.shape)
    pcm_ref[...] = jnp.broadcast_to(jnp.sum(pcm), pcm_ref.shape)


# --------------------------------------------------------------------------------------
# wrappers around pallas_call
# --------------------------------------------------------------------------------------
def _avg_pool(t, F):
    s = jax.lax.reduce_window(t, 0.0, jax.lax.add, (1, 1, F, F), (1, 1, F, F), "VALID")
    return s / float(F * F)


def compute_luminance(img):
    """RGB (B,3,H,W) -> pooled luminance Y (B,1,H//F,W//F).
    I/Q are never consumed by the greyscale FSIM, so they are not computed at all."""
    B, C, H, W = img.shape
    F = max(1, round(min(H, W) / 256))
    fuse_pool = F > 1 and H % F == 0 and W % F == 0
    if C == 3:
        Hp, Wp = (H // F, W // F) if fuse_pool else (H, W)
        kern = functools.partial(_y_pool_kernel, F=F if fuse_pool else 1, H=H, W=W)
        y = pl.pallas_call(
            kern,
            out_shape=jax.ShapeDtypeStruct((B, 1, Hp, Wp), jnp.float32),
            grid=(B,),
            in_specs=[pl.BlockSpec((1, 3, H, W), lambda b: (b, 0, 0, 0))],
            out_specs=pl.BlockSpec((1, 1, Hp, Wp), lambda b: (b, 0, 0, 0)),
            compiler_params=_parallel(1),
        )(img)
        if F > 1 and not fuse_pool:
            y = _avg_pool(y, F)   # non-divisible corner case: XLA fallback (truncating)
    else:
        y = jnp.mean(img, axis=1, keepdims=True)
        if F > 1:
            y = _avg_pool(y, F)
    return y


def calculate_gradient_map(Y):
    """Y: (B,1,H,W) -> gradient magnitude (B,1,H,W) via zero-padded separable 3x3 conv."""
    B, _, H, W = Y.shape
    # TODO(synk): the 1-pixel halo is still materialized via jnp.pad (one extra HBM
    # copy of Y); an in-kernel boundary-masked variant would remove it.
    ypad = jnp.pad(Y, ((0, 0), (0, 0), (1, 1), (1, 1)))
    kern = functools.partial(_grad_kernel, H=H, W=W)
    return pl.pallas_call(
        kern,
        out_shape=jax.ShapeDtypeStruct((B, 1, H, W), jnp.float32),
        grid=(B,),
        in_specs=[pl.BlockSpec((1, 1, H + 2, W + 2), lambda b: (b, 0, 0, 0))],
        out_specs=pl.BlockSpec((1, 1, H, W), lambda b: (b, 0, 0, 0)),
        compiler_params=_parallel(1),
    )(ypad)


def _phase_energy_pallas(E, O):
    """E, O: (B, S, NO, H, W) -> sumAn, Energy each (B, NO, H, W).
    Operates directly on the native layout: no transpose / reshape HBM round trip."""
    B, S, NO, H, W = E.shape
    kern = functools.partial(_phase_energy_kernel, nscale=S)
    sum_an, energy = pl.pallas_call(
        kern,
        out_shape=[jax.ShapeDtypeStruct((B, NO, H, W), jnp.float32)] * 2,
        grid=(B, NO),
        in_specs=[pl.BlockSpec((1, S, 1, H, W), lambda b, o: (b, 0, o, 0, 0))] * 2,
        out_specs=[pl.BlockSpec((1, 1, H, W), lambda b, o: (b, o, 0, 0))] * 2,
        compiler_params=_parallel(2),
    )(E, O)
    return sum_an, energy


def _fsim_score_pallas(pc1, pc2, g1, g2):
    """Fused similarity-map + per-batch partial sums.  Inputs (B,H,W) -> (B,)."""
    B, H, W = pc1.shape
    HW = H * W
    if HW % 128 == 0:
        # Lane-dense flattening: avoids masked partial stores / poor lane occupancy.
        shape = (B, HW // 128, 128)
        pc1, pc2, g1, g2 = (t.reshape(shape) for t in (pc1, pc2, g1, g2))
    R, C = pc1.shape[1], pc1.shape[2]
    sim_sum, pcm_sum = pl.pallas_call(
        _fsim_kernel,
        out_shape=[jax.ShapeDtypeStruct((B, 1, 128), jnp.float32)] * 2,
        grid=(B,),
        in_specs=[pl.BlockSpec((1, R, C), lambda b: (b, 0, 0))] * 4,
        out_specs=[pl.BlockSpec((1, 1, 128), lambda b: (b, 0, 0))] * 2,
        compiler_params=_parallel(1),
    )(pc1, pc2, g1, g2)
    return sim_sum[:, 0, 0] / pcm_sum[:, 0, 0]


# --------------------------------------------------------------------------------------
# phase congruency (log-Gabor).  FFT / median stay in plain JAX; the per-pixel energy
# accumulation across scales is the Pallas kernel above.
# --------------------------------------------------------------------------------------
def _create_meshgrid(cols, rows):
    if cols % 2:
        xr = jnp.arange(-(cols - 1) / 2, (cols - 1) / 2 + 1, dtype=jnp.float32) / (cols - 1)
    else:
        xr = jnp.arange(-cols / 2, cols / 2, dtype=jnp.float32) / cols
    if rows % 2:
        yr = jnp.arange(-(rows - 1) / 2, (rows - 1) / 2 + 1, dtype=jnp.float32) / (rows - 1)
    else:
        yr = jnp.arange(-rows / 2, rows / 2, dtype=jnp.float32) / rows
    x, y = jnp.meshgrid(xr, yr)  # 'xy' indexing == (torch meshgrid).T in the reference
    return x, y


def _lowpassfilter(rows, cols):
    cutoff, n = 0.45, 15
    x, y = _create_meshgrid(cols, rows)
    radius = jnp.sqrt(x * x + y * y)
    return jnp.fft.ifftshift(1.0 / (1.0 + (radius / cutoff) ** (2 * n)))


def phasecong2(Y):
    """Y: (B,1,H,W) float32 -> phase congruency map (B,H,W)."""
    B, _, rows, cols = Y.shape
    img = Y[:, 0]

    # TODO(synk): 2-D FFT/IFFT have no Pallas/Mosaic primitive; done with jnp.fft.
    imagefft = jnp.fft.fft2(img)  # (B, rows, cols) complex

    x, y = _create_meshgrid(cols, rows)
    radius = jnp.fft.ifftshift(jnp.sqrt(x * x + y * y))
    theta = jnp.fft.ifftshift(jnp.arctan2(-y, x))
    radius = radius.at[0, 0].set(1.0)
    sintheta = jnp.sin(theta)
    costheta = jnp.cos(theta)

    lp = _lowpassfilter(rows, cols)
    fo = jnp.asarray(
        1.0 / (MIN_WAVELENGTH * (float(MULT) ** jnp.arange(NSCALE, dtype=jnp.float32))))

    term2 = jnp.log(radius[None] / fo[:, None, None])
    log_gabor = jnp.exp(-(term2 ** 2) / DEN) * lp[None]          # (S, R, C)
    log_gabor = log_gabor.at[:, 0, 0].set(0.0)

    angl = jnp.arange(NORIENT, dtype=jnp.float32) / NORIENT * PI  # (O,)
    ds = sintheta[None] * jnp.cos(angl)[:, None, None] - costheta[None] * jnp.sin(angl)[:, None, None]
    dc = costheta[None] * jnp.cos(angl)[:, None, None] + sintheta[None] * jnp.sin(angl)[:, None, None]
    dtheta = jnp.abs(jnp.arctan2(ds, dc))
    spread = jnp.exp(-(dtheta ** 2) / (2.0 * THETA_SIGMA ** 2))   # (O, R, C)

    fls = log_gabor[:, None] * spread[None]                       # (S, O, R, C)
    ifft_filter = jnp.real(jnp.fft.ifft2(fls)) * math.sqrt(rows * cols)  # (S, O, R, C)

    EO = jnp.fft.ifft2(fls[None] * imagefft[:, None, None])       # (B, S, O, R, C)
    E = jnp.real(EO).astype(jnp.float32)
    O = jnp.imag(EO).astype(jnp.float32)

    # --- Pallas: accumulate An / Energy over scales, per (batch, orientation) ---
    sum_an, energy = _phase_energy_pallas(E, O)                   # (B, O, R, C) each

    # --- noise threshold estimate (small, scalar-ish; plain JAX) ---
    an0_sq = E[:, 0] ** 2 + O[:, 0] ** 2                          # (B, O, R, C)
    flat = an0_sq.reshape(B, NORIENT, rows * cols)
    # TODO(synk): torch.median (lower median) has no Pallas equivalent; use jnp.sort.
    median_e2n = jnp.sort(flat, axis=-1)[..., (rows * cols - 1) // 2]  # (B, O)

    em_n = jnp.sum(fls[0] ** 2, axis=(-2, -1))                    # (O,)
    noise_power = -(median_e2n / math.log(0.5)) / em_n[None]      # (B, O)

    est_sum_an2 = jnp.sum(ifft_filter ** 2, axis=0)               # (O, R, C)
    sum_est_sum_an2 = jnp.sum(est_sum_an2, axis=(-2, -1))         # (O,)

    rolling = (ifft_filter * jnp.roll(ifft_filter, 1, axis=0)
               + ifft_filter * jnp.roll(ifft_filter, 2, axis=0)
               + ifft_filter * jnp.roll(ifft_filter, 3, axis=0))
    est_sum_aiaj = jnp.sum(rolling, axis=0) / 2.0                 # (O, R, C)
    sum_est_sum_aiaj = jnp.sum(est_sum_aiaj, axis=(-2, -1))       # (O,)

    est_noise_energy2 = 2.0 * noise_power * sum_est_sum_an2[None] + 4.0 * noise_power * sum_est_sum_aiaj[None]
    tau = jnp.sqrt(est_noise_energy2 / 2.0)
    est_noise_energy = tau * math.sqrt(PI / 2.0)
    est_noise_energy_sigma = jnp.sqrt((2.0 - PI / 2.0) * tau ** 2)
    T = (est_noise_energy + K_NOISE * est_noise_energy_sigma) / 1.7  # (B, O)

    an_all = jnp.sum(sum_an, axis=1)                              # (B, R, C)
    diff = energy - T[:, :, None, None]
    energy_all = jnp.sum(jnp.where(diff < 0.0, 0.0, diff), axis=1)
    return energy_all / an_all                                     # (B, R, C)


# --------------------------------------------------------------------------------------
# full FSIM forward
# --------------------------------------------------------------------------------------
def fsim(imgr, imgd):
    B = imgr.shape[0]
    # Batch ref + distorted images together: one dispatch per Pallas/FFT pass and a
    # 2B-long grid for better DMA/compute overlap.
    imgs = jnp.concatenate([imgr, imgd], axis=0)        # (2B, 3, H, W)

    Y = compute_luminance(imgs)                          # (2B, 1, H', W')
    PC = phasecong2(Y)                                   # (2B, H', W')
    G = calculate_gradient_map(Y)[:, 0]                  # (2B, H', W')

    PC1, PC2 = PC[:B], PC[B:]
    g1, g2 = G[:B], G[B:]

    per_batch = _fsim_score_pallas(PC1, PC2, g1, g2)     # (B,)
    return jnp.mean(per_batch)


if __name__ == "__main__":
    key = jax.random.PRNGKey(0)
    k1, k2 = jax.random.split(key)
    # small shapes consistent with the module: batch=2, 3 colour channels, 16x16 spatial
    imgr = jax.random.uniform(k1, (2, 3, 16, 16), jnp.float32, 0.0, 255.0)
    imgd = jax.random.uniform(k2, (2, 3, 16, 16), jnp.float32, 0.0, 255.0)

    out = jax.jit(fsim)(imgr, imgd)
    jax.block_until_ready(out)
    print("KERNEL_OK")
</pallas_src>

<mosaic_0001>
module attributes {stable_mosaic.version = 11 : i64} {
  func.func @_y_pool_kernel(%arg0: i32, %arg1: memref<1x3x16x16xf32, #tpu.memory_space<vmem>>, %arg2: memref<1x1x16x16xf32, #tpu.memory_space<vmem>>) attributes {dimension_semantics = [#tpu.dimension_semantics<parallel>], iteration_bounds = array<i64: 4>, scalar_prefetch = 0 : i64, scratch_operands = 0 : i64, tpu.core_type = #tpu.core_type<tc>, window_params = [{transform_indices = @transform_0, window_bounds = array<i64: 1, 3, 16, 16>}, {transform_indices = @transform_1, window_bounds = array<i64: 1, 1, 16, 16>}]} {
    %c0 = arith.constant 0 : index
    %c0_0 = arith.constant 0 : index
    %c0_1 = arith.constant 0 : index
    %c0_2 = arith.constant 0 : index
    %0 = vector.load %arg1[%c0, %c0_0, %c0_1, %c0_2] : memref<1x3x16x16xf32, #tpu.memory_space<vmem>>, vector<1x1x16x16xf32>
    %1 = vector.shape_cast %0 : vector<1x1x16x16xf32> to vector<16x16xf32>
    %c0_3 = arith.constant 0 : index
    %c1 = arith.constant 1 : index
    %c0_4 = arith.constant 0 : index
    %c0_5 = arith.constant 0 : index
    %2 = vector.load %arg1[%c0_3, %c1, %c0_4, %c0_5] : memref<1x3x16x16xf32, #tpu.memory_space<vmem>>, vector<1x1x16x16xf32>
    %3 = vector.shape_cast %2 : vector<1x1x16x16xf32> to vector<16x16xf32>
    %c0_6 = arith.constant 0 : index
    %c2 = arith.constant 2 : index
    %c0_7 = arith.constant 0 : index
    %c0_8 = arith.constant 0 : index
    %4 = vector.load %arg1[%c0_6, %c2, %c0_7, %c0_8] : memref<1x3x16x16xf32, #tpu.memory_space<vmem>>, vector<1x1x16x16xf32>
    %5 = vector.shape_cast %4 : vector<1x1x16x16xf32> to vector<16x16xf32>
    %cst = arith.constant 2.990000e-01 : f32
    %6 = vector.broadcast %cst : f32 to vector<16x16xf32>
    %7 = arith.mulf %6, %1 : vector<16x16xf32>
    %cst_9 = arith.constant 5.870000e-01 : f32
    %8 = vector.broadcast %cst_9 : f32 to vector<16x16xf32>
    %9 = arith.mulf %8, %3 : vector<16x16xf32>
    %10 = arith.addf %7, %9 : vector<16x16xf32>
    %cst_10 = arith.constant 1.140000e-01 : f32
    %11 = vector.broadcast %cst_10 : f32 to vector<16x16xf32>
    %12 = arith.mulf %11, %5 : vector<16x16xf32>
    %13 = arith.addf %10, %12 : vector<16x16xf32>
    %c0_11 = arith.constant 0 : index
    %c0_12 = arith.constant 0 : index
    %c0_13 = arith.constant 0 : index
    %c0_14 = arith.constant 0 : index
    %14 = vector.load %arg2[%c0_11, %c0_12, %c0_13, %c0_14] : memref<1x1x16x16xf32, #tpu.memory_space<vmem>>, vector<1x1x16x16xf32>
    %15 = vector.shape_cast %14 : vector<1x1x16x16xf32> to vector<16x16xf32>
    %16 = vector.shape_cast %13 : vector<16x16xf32> to vector<1x1x16x16xf32>
    tpu.vector_store %arg2[%c0_11, %c0_12, %c0_13, %c0_14], %16 {strides = array<i32>} : memref<1x1x16x16xf32, #tpu.memory_space<vmem>>, vector<1x1x16x16xf32>,
    return
  }
  func.func @transform_0(%arg0: i32) -> (i32, i32, i32, i32) {
    %c0_i32 = arith.constant 0 : i32
    %c0_i32_0 = arith.constant 0 : i32
    %c0_i32_1 = arith.constant 0 : i32
    %c0_i32_2 = arith.constant 0 : i32
    return %arg0, %c0_i32, %c0_i32_0, %c0_i32_1 : i32, i32, i32, i32
  }
  func.func @transform_1(%arg0: i32) -> (i32, i32, i32, i32) {
    %c0_i32 = arith.constant 0 : i32
    %c0_i32_0 = arith.constant 0 : i32
    %c0_i32_1 = arith.constant 0 : i32
    %c0_i32_2 = arith.constant 0 : i32
    return %arg0, %c0_i32, %c0_i32_0, %c0_i32_1 : i32, i32, i32, i32
  }
}

module attributes {stable_mosaic.version = 11 : i64} {
  func.func @_grad_kernel(%arg0: i32, %arg1: memref<1x1x18x18xf32, #tpu.memory_space<vmem>>, %arg2: memref<1x1x16x16xf32, #tpu.memory_space<vmem>>) attributes {dimension_semantics = [#tpu.dimension_semantics<parallel>], iteration_bounds = array<i64: 4>, scalar_prefetch = 0 : i64, scratch_operands = 0 : i64, tpu.core_type = #tpu.core_type<tc>, window_params = [{transform_indices = @transform_0, window_bounds = array<i64: 1, 1, 18, 18>}, {transform_indices = @transform_1, window_bounds = array<i64: 1, 1, 16, 16>}]} {
    %c0 = arith.constant 0 : index
    %c0_0 = arith.constant 0 : index
    %c0_1 = arith.constant 0 : index
    %c0_2 = arith.constant 0 : index
    %0 = vector.load %arg1[%c0, %c0_0, %c0_1, %c0_2] : memref<1x1x18x18xf32, #tpu.memory_space<vmem>>, vector<1x1x16x18xf32>
    %1 = vector.shape_cast %0 : vector<1x1x16x18xf32> to vector<16x18xf32>
    %c0_3 = arith.constant 0 : index
    %c0_4 = arith.constant 0 : index
    %c1 = arith.constant 1 : index
    %c0_5 = arith.constant 0 : index
    %2 = vector.load %arg1[%c0_3, %c0_4, %c1, %c0_5] : memref<1x1x18x18xf32, #tpu.memory_space<vmem>>, vector<1x1x16x18xf32>
    %3 = vector.shape_cast %2 : vector<1x1x16x18xf32> to vector<16x18xf32>
    %c0_6 = arith.constant 0 : index
    %c0_7 = arith.constant 0 : index
    %c2 = arith.constant 2 : index
    %c0_8 = arith.constant 0 : index
    %4 = vector.load %arg1[%c0_6, %c0_7, %c2, %c0_8] : memref<1x1x18x18xf32, #tpu.memory_space<vmem>>, vector<1x1x16x18xf32>
    %5 = vector.shape_cast %4 : vector<1x1x16x18xf32> to vector<16x18xf32>
    %6 = arith.addf %1, %5 : vector<16x18xf32>
    %cst = arith.constant 3.000000e+00 : f32
    %7 = vector.broadcast %cst : f32 to vector<16x18xf32>
    %8 = arith.mulf %7, %6 : vector<16x18xf32>
    %cst_9 = arith.constant 1.000000e+01 : f32
    %9 = vector.broadcast %cst_9 : f32 to vector<16x18xf32>
    %10 = arith.mulf %9, %3 : vector<16x18xf32>
    %11 = arith.addf %8, %10 : vector<16x18xf32>
    %12 = arith.subf %5, %1 : vector<16x18xf32>
    %13 = vector.extract_strided_slice %11 {offsets = [0, 2], sizes = [16, 16], strides = [1, 1]} : vector<16x18xf32> to vector<16x16xf32>
    %14 = vector.extract_strided_slice %11 {offsets = [0, 0], sizes = [16, 16], strides = [1, 1]} : vector<16x18xf32> to vector<16x16xf32>
    %15 = arith.subf %13, %14 : vector<16x16xf32>
    %cst_10 = arith.constant 6.250000e-02 : f32
    %16 = vector.broadcast %cst_10 : f32 to vector<16x16xf32>
    %17 = arith.mulf %15, %16 : vector<16x16xf32>
    %18 = vector.extract_strided_slice %12 {offsets = [0, 0], sizes = [16, 16], strides = [1, 1]} : vector<16x18xf32> to vector<16x16xf32>
    %19 = vector.extract_strided_slice %12 {offsets = [0, 2], sizes = [16, 16], strides = [1, 1]} : vector<16x18xf32> to vector<16x16xf32>
    %20 = arith.addf %18, %19 : vector<16x16xf32>
    %cst_11 = arith.constant 3.000000e+00 : f32
    %21 = vector.broadcast %cst_11 : f32 to vector<16x16xf32>
    %22 = arith.mulf %21, %20 : vector<16x16xf32>
    %23 = vector.extract_strided_slice %12 {offsets = [0, 1], sizes = [16, 16], strides = [1, 1]} : vector<16x18xf32> to vector<16x16xf32>
    %cst_12 = arith.constant 1.000000e+01 : f32
    %24 = vector.broadcast %cst_12 : f32 to vector<16x16xf32>
    %25 = arith.mulf %24, %23 : vector<16x16xf32>
    %26 = arith.addf %22, %25 : vector<16x16xf32>
    %cst_13 = arith.constant 6.250000e-02 : f32
    %27 = vector.broadcast %cst_13 : f32 to vector<16x16xf32>
    %28 = arith.mulf %26, %27 : vector<16x16xf32>
    %29 = arith.mulf %17, %17 : vector<16x16xf32>
    %30 = arith.mulf %28, %28 : vector<16x16xf32>
    %31 = arith.addf %29, %30 : vector<16x16xf32>
    %32 = math.sqrt %31 : vector<16x16xf32>
    %c0_14 = arith.constant 0 : index
    %c0_15 = arith.constant 0 : index
    %c0_16 = arith.constant 0 : index
    %c0_17 = arith.constant 0 : index
    %33 = vector.load %arg2[%c0_14, %c0_15, %c0_16, %c0_17] : memref<1x1x16x16xf32, #tpu.memory_space<vmem>>, vector<1x1x16x16xf32>
    %34 = vector.shape_cast %33 : vector<1x1x16x16xf32> to vector<16x16xf32>
    %35 = vector.shape_cast %32 : vector<16x16xf32> to vector<1x1x16x16xf32>
    tpu.vector_store %arg2[%c0_14, %c0_15, %c0_16, %c0_17], %35 {strides = array<i32>} : memref<1x1x16x16xf32, #tpu.memory_space<vmem>>, vector<1x1x16x16xf32>,
    return
  }
  func.func @transform_0(%arg0: i32) -> (i32, i32, i32, i32) {
    %c0_i32 = arith.constant 0 : i32
    %c0_i32_0 = arith.constant 0 : i32
    %c0_i32_1 = arith.constant 0 : i32
    %c0_i32_2 = arith.constant 0 : i32
    return %arg0, %c0_i32, %c0_i32_0, %c0_i32_1 : i32, i32, i32, i32
  }
  func.func @transform_1(%arg0: i32) -> (i32, i32, i32, i32) {
    %c0_i32 = arith.constant 0 : i32
    %c0_i32_0 = arith.constant 0 : i32
    %c0_i32_1 = arith.constant 0 : i32
    %c0_i32_2 = arith.constant 0 : i32
    return %arg0, %c0_i32, %c0_i32_0, %c0_i32_1 : i32, i32, i32, i32
  }
}

module attributes {stable_mosaic.version = 11 : i64} {
  func.func @_phase_energy_kernel(%arg0: i32, %arg1: i32, %arg2: memref<1x4x1x16x16xf32, #tpu.memory_space<vmem>>, %arg3: memref<1x4x1x16x16xf32, #tpu.memory_space<vmem>>, %arg4: memref<1x1x16x16xf32, #tpu.memory_space<vmem>>, %arg5: memref<1x1x16x16xf32, #tpu.memory_space<vmem>>) attributes {dimension_semantics = [#tpu.dimension_semantics<parallel>, #tpu.dimension_semantics<parallel>], iteration_bounds = array<i64: 4, 4>, scalar_prefetch = 0 : i64, scratch_operands = 0 : i64, tpu.core_type = #tpu.core_type<tc>, window_params = [{transform_indices = @transform_0, window_bounds = array<i64: 1, 4, 1, 16, 16>}, {transform_indices = @transform_1, window_bounds = array<i64: 1, 4, 1, 16, 16>}, {transform_indices = @transform_2, window_bounds = array<i64: 1, 1, 16, 16>}, {transform_indices = @transform_3, window_bounds = array<i64: 1, 1, 16, 16>}]} {
    %c0 = arith.constant 0 : index
    %c0_0 = arith.constant 0 : index
    %c0_1 = arith.constant 0 : index
    %c0_2 = arith.constant 0 : index
    %c0_3 = arith.constant 0 : index
    %0 = vector.load %arg2[%c0, %c0_0, %c0_1, %c0_2, %c0_3] : memref<1x4x1x16x16xf32, #tpu.memory_space<vmem>>, vector<1x1x1x16x16xf32>
    %1 = vector.shape_cast %0 : vector<1x1x1x16x16xf32> to vector<16x16xf32>
    %c0_4 = arith.constant 0 : index
    %c0_5 = arith.constant 0 : index
    %c0_6 = arith.constant 0 : index
    %c0_7 = arith.constant 0 : index
    %c0_8 = arith.constant 0 : index
    %2 = vector.load %arg3[%c0_4, %c0_5, %c0_6, %c0_7, %c0_8] : memref<1x4x1x16x16xf32, #tpu.memory_space<vmem>>, vector<1x1x1x16x16xf32>
    %3 = vector.shape_cast %2 : vector<1x1x1x16x16xf32> to vector<16x16xf32>
    %4 = arith.mulf %1, %1 : vector<16x16xf32>
    %5 = arith.mulf %3, %3 : vector<16x16xf32>
    %6 = arith.addf %4, %5 : vector<16x16xf32>
    %7 = math.sqrt %6 : vector<16x16xf32>
    %c0_9 = arith.constant 0 : index
    %c1 = arith.constant 1 : index
    %c0_10 = arith.constant 0 : index
    %c0_11 = arith.constant 0 : index
    %c0_12 = arith.constant 0 : index
    %8 = vector.load %arg2[%c0_9, %c1, %c0_10, %c0_11, %c0_12] : memref<1x4x1x16x16xf32, #tpu.memory_space<vmem>>, vector<1x1x1x16x16xf32>
    %9 = vector.shape_cast %8 : vector<1x1x1x16x16xf32> to vector<16x16xf32>
    %c0_13 = arith.constant 0 : index
    %c1_14 = arith.constant 1 : index
    %c0_15 = arith.constant 0 : index
    %c0_16 = arith.constant 0 : index
    %c0_17 = arith.constant 0 : index
    %10 = vector.load %arg3[%c0_13, %c1_14, %c0_15, %c0_16, %c0_17] : memref<1x4x1x16x16xf32, #tpu.memory_space<vmem>>, vector<1x1x1x16x16xf32>
    %11 = vector.shape_cast %10 : vector<1x1x1x16x16xf32> to vector<16x16xf32>
    %12 = arith.mulf %9, %9 : vector<16x16xf32>
    %13 = arith.mulf %11, %11 : vector<16x16xf32>
    %14 = arith.addf %12, %13 : vector<16x16xf32>
    %15 = math.sqrt %14 : vector<16x16xf32>
    %16 = arith.addf %7, %15 : vector<16x16xf32>
    %17 = arith.addf %1, %9 : vector<16x16xf32>
    %18 = arith.addf %3, %11 : vector<16x16xf32>
    %c0_18 = arith.constant 0 : index
    %c2 = arith.constant 2 : index
    %c0_19 = arith.constant 0 : index
    %c0_20 = arith.constant 0 : index
    %c0_21 = arith.constant 0 : index
    %19 = vector.load %arg2[%c0_18, %c2, %c0_19, %c0_20, %c0_21] : memref<1x4x1x16x16xf32, #tpu.memory_space<vmem>>, vector<1x1x1x16x16xf32>
    %20 = vector.shape_cast %19 : vector<1x1x1x16x16xf32> to vector<16x16xf32>
    %c0_22 = arith.constant 0 : index
    %c2_23 = arith.constant 2 : index
    %c0_24 = arith.constant 0 : index
    %c0_25 = arith.constant 0 : index
    %c0_26 = arith.constant 0 : index
    %21 = vector.load %arg3[%c0_22, %c2_23, %c0_24, %c0_25, %c0_26] : memref<1x4x1x16x16xf32, #tpu.memory_space<vmem>>, vector<1x1x1x16x16xf32>
    %22 = vector.shape_cast %21 : vector<1x1x1x16x16xf32> to vector<16x16xf32>
    %23 = arith.mulf %20, %20 : vector<16x16xf32>
    %24 = arith.mulf %22, %22 : vector<16x16xf32>
    %25 = arith.addf %23, %24 : vector<16x16xf32>
    %26 = math.sqrt %25 : vector<16x16xf32>
    %27 = arith.addf %16, %26 : vector<16x16xf32>
    %28 = arith.addf %17, %20 : vector<16x16xf32>
    %29 = arith.addf %18, %22 : vector<16x16xf32>
    %c0_27 = arith.constant 0 : index
    %c3 = arith.constant 3 : index
    %c0_28 = arith.constant 0 : index
    %c0_29 = arith.constant 0 : index
    %c0_30 = arith.constant 0 : index
    %30 = vector.load %arg2[%c0_27, %c3, %c0_28, %c0_29, %c0_30] : memref<1x4x1x16x16xf32, #tpu.memory_space<vmem>>, vector<1x1x1x16x16xf32>
    %31 = vector.shape_cast %30 : vector<1x1x1x16x16xf32> to vector<16x16xf32>
    %c0_31 = arith.constant 0 : index
    %c3_32 = arith.constant 3 : index
    %c0_33 = arith.constant 0 : index
    %c0_34 = arith.constant 0 : index
    %c0_35 = arith.constant 0 : index
    %32 = vector.load %arg3[%c0_31, %c3_32, %c0_33, %c0_34, %c0_35] : memref<1x4x1x16x16xf32, #tpu.memory_space<vmem>>, vector<1x1x1x16x16xf32>
    %33 = vector.shape_cast %32 : vector<1x1x1x16x16xf32> to vector<16x16xf32>
    %34 = arith.mulf %31, %31 : vector<16x16xf32>
    %35 = arith.mulf %33, %33 : vector<16x16xf32>
    %36 = arith.addf %34, %35 : vector<16x16xf32>
    %37 = math.sqrt %36 : vector<16x16xf32>
    %38 = arith.addf %27, %37 : vector<16x16xf32>
    %39 = arith.addf %28, %31 : vector<16x16xf32>
    %40 = arith.addf %29, %33 : vector<16x16xf32>
    %41 = arith.mulf %39, %39 : vector<16x16xf32>
    %42 = arith.mulf %40, %40 : vector<16x16xf32>
    %43 = arith.addf %41, %42 : vector<16x16xf32>
    %44 = math.sqrt %43 : vector<16x16xf32>
    %cst = arith.constant 9.99999974E-5 : f32
    %45 = vector.broadcast %cst : f32 to vector<16x16xf32>
    %46 = arith.addf %44, %45 : vector<16x16xf32>
    %47 = tpu.reciprocal %46 {approx = true} : vector<16x16xf32> -> vector<16x16xf32>
    %48 = arith.mulf %39, %47 : vector<16x16xf32>
    %49 = arith.mulf %40, %47 : vector<16x16xf32>
    %cst_36 = arith.constant 0.000000e+00 : f32
    %50 = vector.broadcast %cst_36 : f32 to vector<16x16xf32>
    %c0_37 = arith.constant 0 : index
    %c0_38 = arith.constant 0 : index
    %c0_39 = arith.constant 0 : index
    %c0_40 = arith.constant 0 : index
    %c0_41 = arith.constant 0 : index
    %51 = vector.load %arg2[%c0_37, %c0_38, %c0_39, %c0_40, %c0_41] : memref<1x4x1x16x16xf32, #tpu.memory_space<vmem>>, vector<1x1x1x16x16xf32>
    %52 = vector.shape_cast %51 : vector<1x1x1x16x16xf32> to vector<16x16xf32>
    %c0_42 = arith.constant 0 : index
    %c0_43 = arith.constant 0 : index
    %c0_44 = arith.constant 0 : index
    %c0_45 = arith.constant 0 : index
    %c0_46 = arith.constant 0 : index
    %53 = vector.load %arg3[%c0_42, %c0_43, %c0_44, %c0_45, %c0_46] : memref<1x4x1x16x16xf32, #tpu.memory_space<vmem>>, vector<1x1x1x16x16xf32>
    %54 = vector.shape_cast %53 : vector<1x1x1x16x16xf32> to vector<16x16xf32>
    %55 = arith.mulf %52, %48 : vector<16x16xf32>
    %56 = arith.addf %50, %55 : vector<16x16xf32>
    %57 = arith.mulf %54, %49 : vector<16x16xf32>
    %58 = arith.addf %56, %57 : vector<16x16xf32>
    %59 = arith.mulf %52, %49 : vector<16x16xf32>
    %60 = arith.mulf %54, %48 : vector<16x16xf32>
    %61 = arith.subf %59, %60 : vector<16x16xf32>
    %62 = math.absf %61 : vector<16x16xf32>
    %63 = arith.subf %58, %62 : vector<16x16xf32>
    %c0_47 = arith.constant 0 : index
    %c1_48 = arith.constant 1 : index
    %c0_49 = arith.constant 0 : index
    %c0_50 = arith.constant 0 : index
    %c0_51 = arith.constant 0 : index
    %64 = vector.load %arg2[%c0_47, %c1_48, %c0_49, %c0_50, %c0_51] : memref<1x4x1x16x16xf32, #tpu.memory_space<vmem>>, vector<1x1x1x16x16xf32>
    %65 = vector.shape_cast %64 : vector<1x1x1x16x16xf32> to vector<16x16xf32>
    %c0_52 = arith.constant 0 : index
    %c1_53 = arith.constant 1 : index
    %c0_54 = arith.constant 0 : index
    %c0_55 = arith.constant 0 : index
    %c0_56 = arith.constant 0 : index
    %66 = vector.load %arg3[%c0_52, %c1_53, %c0_54, %c0_55, %c0_56] : memref<1x4x1x16x16xf32, #tpu.memory_space<vmem>>, vector<1x1x1x16x16xf32>
    %67 = vector.shape_cast %66 : vector<1x1x1x16x16xf32> to vector<16x16xf32>
    %68 = arith.mulf %65, %48 : vector<16x16xf32>
    %69 = arith.addf %63, %68 : vector<16x16xf32>
    %70 = arith.mulf %67, %49 : vector<16x16xf32>
    %71 = arith.addf %69, %70 : vector<16x16xf32>
    %72 = arith.mulf %65, %49 : vector<16x16xf32>
    %73 = arith.mulf %67, %48 : vector<16x16xf32>
    %74 = arith.subf %72, %73 : vector<16x16xf32>
    %75 = math.absf %74 : vector<16x16xf32>
    %76 = arith.subf %71, %75 : vector<16x16xf32>
    %c0_57 = arith.constant 0 : index
    %c2_58 = arith.constant 2 : index
    %c0_59 = arith.constant 0 : index
    %c0_60 = arith.constant 0 : index
    %c0_61 = arith.constant 0 : index
    %77 = vector.load %arg2[%c0_57, %c2_58, %c0_59, %c0_60, %c0_61] : memref<1x4x1x16x16xf32, #tpu.memory_space<vmem>>, vector<1x1x1x16x16xf32>
    %78 = vector.shape_cast %77 : vector<1x1x1x16x16xf32> to vector<16x16xf32>
    %c0_62 = arith.constant 0 : index
    %c2_63 = arith.constant 2 : index
    %c0_64 = arith.constant 0 : index
    %c0_65 = arith.constant 0 : index
    %c0_66 = arith.constant 0 : index
    %79 = vector.load %arg3[%c0_62, %c2_63, %c0_64, %c0_65, %c0_66] : memref<1x4x1x16x16xf32, #tpu.memory_space<vmem>>, vector<1x1x1x16x16xf32>
    %80 = vector.shape_cast %79 : vector<1x1x1x16x16xf32> to vector<16x16xf32>
    %81 = arith.mulf %78, %48 : vector<16x16xf32>
    %82 = arith.addf %76, %81 : vector<16x16xf32>
    %83 = arith.mulf %80, %49 : vector<16x16xf32>
    %84 = arith.addf %82, %83 : vector<16x16xf32>
    %85 = arith.mulf %78, %49 : vector<16x16xf32>
    %86 = arith.mulf %80, %48 : vector<16x16xf32>
    %87 = arith.subf %85, %86 : vector<16x16xf32>
    %88 = math.absf %87 : vector<16x16xf32>
    %89 = arith.subf %84, %88 : vector<16x16xf32>
    %c0_67 = arith.constant 0 : index
    %c3_68 = arith.constant 3 : index
    %c0_69 = arith.constant 0 : index
    %c0_70 = arith.constant 0 : index
    %c0_71 = arith.constant 0 : index
    %90 = vector.load %arg2[%c0_67, %c3_68, %c0_69, %c0_70, %c0_71] : memref<1x4x1x16x16xf32, #tpu.memory_space<vmem>>, vector<1x1x1x16x16xf32>
    %91 = vector.shape_cast %90 : vector<1x1x1x16x16xf32> to vector<16x16xf32>
    %c0_72 = arith.constant 0 : index
    %c3_73 = arith.constant 3 : index
    %c0_74 = arith.constant 0 : index
    %c0_75 = arith.constant 0 : index
    %c0_76 = arith.constant 0 : index
    %92 = vector.load %arg3[%c0_72, %c3_73, %c0_74, %c0_75, %c0_76] : memref<1x4x1x16x16xf32, #tpu.memory_space<vmem>>, vector<1x1x1x16x16xf32>
    %93 = vector.shape_cast %92 : vector<1x1x1x16x16xf32> to vector<16x16xf32>
    %94 = arith.mulf %91, %48 : vector<16x16xf32>
    %95 = arith.addf %89, %94 : vector<16x16xf32>
    %96 = arith.mulf %93, %49 : vector<16x16xf32>
    %97 = arith.addf %95, %96 : vector<16x16xf32>
    %98 = arith.mulf %91, %49 : vector<16x16xf32>
    %99 = arith.mulf %93, %48 : vector<16x16xf32>
    %100 = arith.subf %98, %99 : vector<16x16xf32>
    %101 = math.absf %100 : vector<16x16xf32>
    %102 = arith.subf %97, %101 : vector<16x16xf32>
    %c0_77 = arith.constant 0 : index
    %c0_78 = arith.constant 0 : index
    %c0_79 = arith.constant 0 : index
    %c0_80 = arith.constant 0 : index
    %103 = vector.load %arg4[%c0_77, %c0_78, %c0_79, %c0_80] : memref<1x1x16x16xf32, #tpu.memory_space<vmem>>, vector<1x1x16x16xf32>
    %104 = vector.shape_cast %103 : vector<1x1x16x16xf32> to vector<16x16xf32>
    %105 = vector.shape_cast %38 : vector<16x16xf32> to vector<1x1x16x16xf32>
    tpu.vector_store %arg4[%c0_77, %c0_78, %c0_79, %c0_80], %105 {strides = array<i32>} : memref<1x1x16x16xf32, #tpu.memory_space<vmem>>, vector<1x1x16x16xf32>,
    %c0_81 = arith.constant 0 : index
    %c0_82 = arith.constant 0 : index
    %c0_83 = arith.constant 0 : index
    %c0_84 = arith.constant 0 : index
    %106 = vector.load %arg5[%c0_81, %c0_82, %c0_83, %c0_84] : memref<1x1x16x16xf32, #tpu.memory_space<vmem>>, vector<1x1x16x16xf32>
    %107 = vector.shape_cast %106 : vector<1x1x16x16xf32> to vector<16x16xf32>
    %108 = vector.shape_cast %102 : vector<16x16xf32> to vector<1x1x16x16xf32>
    tpu.vector_store %arg5[%c0_81, %c0_82, %c0_83, %c0_84], %108 {strides = array<i32>} : memref<1x1x16x16xf32, #tpu.memory_space<vmem>>, vector<1x1x16x16xf32>,
    return
  }
  func.func @transform_0(%arg0: i32, %arg1: i32) -> (i32, i32, i32, i32, i32) {
    %c0_i32 = arith.constant 0 : i32
    %c0_i32_0 = arith.constant 0 : i32
    %c0_i32_1 = arith.constant 0 : i32
    %c0_i32_2 = arith.constant 0 : i32
    return %arg0, %c0_i32, %arg1, %c0_i32_0, %c0_i32_1 : i32, i32, i32, i32, i32
  }
  func.func @transform_1(%arg0: i32, %arg1: i32) -> (i32, i32, i32, i32, i32) {
    %c0_i32 = arith.constant 0 : i32
    %c0_i32_0 = arith.constant 0 : i32
    %c0_i32_1 = arith.constant 0 : i32
    %c0_i32_2 = arith.constant 0 : i32
    return %arg0, %c0_i32, %arg1, %c0_i32_0, %c0_i32_1 : i32, i32, i32, i32, i32
  }
  func.func @transform_2(%arg0: i32, %arg1: i32) -> (i32, i32, i32, i32) {
    %c0_i32 = arith.constant 0 : i32
    %c0_i32_0 = arith.constant 0 : i32
    %c0_i32_1 = arith.constant 0 : i32
    return %arg0, %arg1, %c0_i32, %c0_i32_0 : i32, i32, i32, i32
  }
  func.func @transform_3(%arg0: i32, %arg1: i32) -> (i32, i32, i32, i32) {
    %c0_i32 = arith.constant 0 : i32
    %c0_i32_0 = arith.constant 0 : i32
    %c0_i32_1 = arith.constant 0 : i32
    return %arg0, %arg1, %c0_i32, %c0_i32_0 : i32, i32, i32, i32
  }
}

module attributes {stable_mosaic.version = 11 : i64} {
  func.func @_fsim_kernel(%arg0: i32, %arg1: memref<1x2x128xf32, #tpu.memory_space<vmem>>, %arg2: memref<1x2x128xf32, #tpu.memory_space<vmem>>, %arg3: memref<1x2x128xf32, #tpu.memory_space<vmem>>, %arg4: memref<1x2x128xf32, #tpu.memory_space<vmem>>, %arg5: memref<1x1x128xf32, #tpu.memory_space<vmem>>, %arg6: memref<1x1x128xf32, #tpu.memory_space<vmem>>) attributes {dimension_semantics = [#tpu.dimension_semantics<parallel>], iteration_bounds = array<i64: 2>, scalar_prefetch = 0 : i64, scratch_operands = 0 : i64, tpu.core_type = #tpu.core_type<tc>, window_params = [{transform_indices = @transform_0, window_bounds = array<i64: 1, 2, 128>}, {transform_indices = @transform_1, window_bounds = array<i64: 1, 2, 128>}, {transform_indices = @transform_2, window_bounds = array<i64: 1, 2, 128>}, {transform_indices = @transform_3, window_bounds = array<i64: 1, 2, 128>}, {transform_indices = @transform_4, window_bounds = array<i64: 1, 1, 128>}, {transform_indices = @transform_5, window_bounds = array<i64: 1, 1, 128>}]} {
    %c0 = arith.constant 0 : index
    %c0_0 = arith.constant 0 : index
    %c0_1 = arith.constant 0 : index
    %0 = vector.load %arg1[%c0, %c0_0, %c0_1] : memref<1x2x128xf32, #tpu.memory_space<vmem>>, vector<1x2x128xf32>
    %1 = vector.shape_cast %0 : vector<1x2x128xf32> to vector<2x128xf32>
    %c0_2 = arith.constant 0 : index
    %c0_3 = arith.constant 0 : index
    %c0_4 = arith.constant 0 : index
    %2 = vector.load %arg2[%c0_2, %c0_3, %c0_4] : memref<1x2x128xf32, #tpu.memory_space<vmem>>, vector<1x2x128xf32>
    %3 = vector.shape_cast %2 : vector<1x2x128xf32> to vector<2x128xf32>
    %c0_5 = arith.constant 0 : index
    %c0_6 = arith.constant 0 : index
    %c0_7 = arith.constant 0 : index
    %4 = vector.load %arg3[%c0_5, %c0_6, %c0_7] : memref<1x2x128xf32, #tpu.memory_space<vmem>>, vector<1x2x128xf32>
    %5 = vector.shape_cast %4 : vector<1x2x128xf32> to vector<2x128xf32>
    %c0_8 = arith.constant 0 : index
    %c0_9 = arith.constant 0 : index
    %c0_10 = arith.constant 0 : index
    %6 = vector.load %arg4[%c0_8, %c0_9, %c0_10] : memref<1x2x128xf32, #tpu.memory_space<vmem>>, vector<1x2x128xf32>
    %7 = vector.shape_cast %6 : vector<1x2x128xf32> to vector<2x128xf32>
    %cst = arith.constant 2.000000e+00 : f32
    %8 = vector.broadcast %cst : f32 to vector<2x128xf32>
    %9 = arith.mulf %8, %1 : vector<2x128xf32>
    %10 = arith.mulf %9, %3 : vector<2x128xf32>
    %cst_11 = arith.constant 8.500000e-01 : f32
    %11 = vector.broadcast %cst_11 : f32 to vector<2x128xf32>
    %12 = arith.addf %10, %11 : vector<2x128xf32>
    %13 = arith.mulf %1, %1 : vector<2x128xf32>
    %14 = arith.mulf %3, %3 : vector<2x128xf32>
    %15 = arith.addf %13, %14 : vector<2x128xf32>
    %cst_12 = arith.constant 8.500000e-01 : f32
    %16 = vector.broadcast %cst_12 : f32 to vector<2x128xf32>
    %17 = arith.addf %15, %16 : vector<2x128xf32>
    %18 = tpu.reciprocal %17 {approx = true} : vector<2x128xf32> -> vector<2x128xf32>
    %19 = arith.mulf %12, %18 : vector<2x128xf32>
    %cst_13 = arith.constant 2.000000e+00 : f32
    %20 = vector.broadcast %cst_13 : f32 to vector<2x128xf32>
    %21 = arith.mulf %20, %5 : vector<2x128xf32>
    %22 = arith.mulf %21, %7 : vector<2x128xf32>
    %cst_14 = arith.constant 1.600000e+02 : f32
    %23 = vector.broadcast %cst_14 : f32 to vector<2x128xf32>
    %24 = arith.addf %22, %23 : vector<2x128xf32>
    %25 = arith.mulf %5, %5 : vector<2x128xf32>
    %26 = arith.mulf %7, %7 : vector<2x128xf32>
    %27 = arith.addf %25, %26 : vector<2x128xf32>
    %cst_15 = arith.constant 1.600000e+02 : f32
    %28 = vector.broadcast %cst_15 : f32 to vector<2x128xf32>
    %29 = arith.addf %27, %28 : vector<2x128xf32>
    %30 = tpu.reciprocal %29 {approx = true} : vector<2x128xf32> -> vector<2x128xf32>
    %31 = arith.mulf %24, %30 : vector<2x128xf32>
    %32 = arith.cmpf ogt, %1, %3 : vector<2x128xf32>
    %33 = arith.select %32, %1, %3 : vector<2x128xi1>, vector<2x128xf32>
    %34 = arith.mulf %31, %19 : vector<2x128xf32>
    %35 = arith.mulf %34, %33 : vector<2x128xf32>
    %36 = vector.shape_cast %35 : vector<2x128xf32> to vector<1x2x128xf32>
    %cst_16 = arith.constant dense<0.000000e+00> : vector<1xf32>
    %37 = vector.multi_reduction <add>, %36, %cst_16 [1, 2] : vector<1x2x128xf32> to vector<1xf32>
    %38 = vector.shape_cast %37 : vector<1xf32> to vector<1x1x1xf32>
    %39 = vector.extract %38[0, 0, 0] : f32 from vector<1x1x1xf32>
    %40 = vector.broadcast %39 : f32 to vector<1x1x128xf32>
    %c0_17 = arith.constant 0 : index
    %c0_18 = arith.constant 0 : index
    %c0_19 = arith.constant 0 : index
    %41 = vector.load %arg5[%c0_17, %c0_18, %c0_19] : memref<1x1x128xf32, #tpu.memory_space<vmem>>, vector<1x1x128xf32>
    tpu.vector_store %arg5[%c0_17, %c0_18, %c0_19], %40 {strides = array<i32>} : memref<1x1x128xf32, #tpu.memory_space<vmem>>, vector<1x1x128xf32>,
    %42 = vector.shape_cast %33 : vector<2x128xf32> to vector<1x2x128xf32>
    %cst_20 = arith.constant dense<0.000000e+00> : vector<1xf32>
    %43 = vector.multi_reduction <add>, %42, %cst_20 [1, 2] : vector<1x2x128xf32> to vector<1xf32>
    %44 = vector.shape_cast %43 : vector<1xf32> to vector<1x1x1xf32>
    %45 = vector.extract %44[0, 0, 0] : f32 from vector<1x1x1xf32>
    %46 = vector.broadcast %45 : f32 to vector<1x1x128xf32>
    %c0_21 = arith.constant 0 : index
    %c0_22 = arith.constant 0 : index
    %c0_23 = arith.constant 0 : index
    %47 = vector.load %arg6[%c0_21, %c0_22, %c0_23] : memref<1x1x128xf32, #tpu.memory_space<vmem>>, vector<1x1x128xf32>
    tpu.vector_store %arg6[%c0_21, %c0_22, %c0_23], %46 {strides = array<i32>} : memref<1x1x128xf32, #tpu.memory_space<vmem>>, vector<1x1x128xf32>,
    return
  }
  func.func @transform_0(%arg0: i32) -> (i32, i32, i32) {
    %c0_i32 = arith.constant 0 : i32
    %c0_i32_0 = arith.constant 0 : i32
    %c0_i32_1 = arith.constant 0 : i32
    return %arg0, %c0_i32, %c0_i32_0 : i32, i32, i32
  }
  func.func @transform_1(%arg0: i32) -> (i32, i32, i32) {
    %c0_i32 = arith.constant 0 : i32
    %c0_i32_0 = arith.constant 0 : i32
    %c0_i32_1 = arith.constant 0 : i32
    return %arg0, %c0_i32, %c0_i32_0 : i32, i32, i32
  }
  func.func @transform_2(%arg0: i32) -> (i32, i32, i32) {
    %c0_i32 = arith.constant 0 : i32
    %c0_i32_0 = arith.constant 0 : i32
    %c0_i32_1 = arith.constant 0 : i32
    return %arg0, %c0_i32, %c0_i32_0 : i32, i32, i32
  }
  func.func @transform_3(%arg0: i32) -> (i32, i32, i32) {
    %c0_i32 = arith.constant 0 : i32
    %c0_i32_0 = arith.constant 0 : i32
    %c0_i32_1 = arith.constant 0 : i32
    return %arg0, %c0_i32, %c0_i32_0 : i32, i32, i32
  }
  func.func @transform_4(%arg0: i32) -> (i32, i32, i32) {
    %c0_i32 = arith.constant 0 : i32
    %c0_i32_0 = arith.constant 0 : i32
    %c0_i32_1 = arith.constant 0 : i32
    return %arg0, %c0_i32, %c0_i32_0 : i32, i32, i32
  }
  func.func @transform_5(%arg0: i32) -> (i32, i32, i32) {
    %c0_i32 = arith.constant 0 : i32
    %c0_i32_0 = arith.constant 0 : i32
    %c0_i32_1 = arith.constant 0 : i32
    return %arg0, %c0_i32, %c0_i32_0 : i32, i32, i32
  }
}

</mosaic_0001>

<llo_original>
// kernel: fsim.4
$region0: #{fsim.4}
  #allocation0 [shape = 'u32[]', space=smem, size = 0x4, offset = 0x4, fixed_abs, tag = 'smem constant byte address 0x4 - core index']
  #allocation1 [shape = 'u32[144,128]{1,0:T(1,128)}', space=vmem, size = 0x12000, scoped, tag = 'internal scratch']
  %s0 = inlined_call_operand.vmem [shape: f32[4,3,16,16], index: 0, kind: input, shape index: {}]
  %s1 = inlined_call_operand.vmem [shape: f32[4,1,16,16], index: 1, kind: output, shape index: {}]
  %s2 = sld [smem:[#allocation0]]
  $region37: #{fsim.4} parent=0
    _
  %s4 = ssub.s32 1, %s2
  %s5 = scalar_select 0, %s4, %s2
  loop: start=0, step=1, limit=6
  $region2: #{fsim.4} parent=0 // loop_pre_header
    _
  $region3: #{fsim.4} parent=0 // loop_header
    %s7 = sphi 0, %s11
    %p8 = scmp.ge.s32.totalorder %s7, 6
    %s17 = sphi 0, %s19
    %s20 = sphi 0, %s17
    %s21 = sphi 0, %s20
    %s37 = sphi 0, %s21
    %s43 = sphi 0, %s45
    %s46 = sphi 0, %s43
    %s47 = sphi 0, %s46
    %s63 = sphi 0, %s47
  $region4: #{fsim.4} parent=0 // loop_header_branch
    %10 = sbr.rel (%p8) target = $region8
  $region5: #{fsim.4} parent=0 // loop_body
    %s12 = ssub.s32 %s7, 1
    %s13 = ssub.s32 %s7, 2
    %s14 = sadd.s32 %s7, 1
    %s15 = ssub.s32 %s7, %s14
    %p16 = scmp.eq.s32.totalorder %s15, 0
    %s18 = sadd.s32 %s17, 1
    %s19 = scalar_select %p16, %s17, %s18
    %p22 = pneg %p16
    %p23 = scmp.eq.s32.totalorder %s7, 3
    %p24 = por %p22, %p23
    %p25 = scmp.ne.s32.totalorder %s17, %s20
    %p26 = scmp.eq.s32.totalorder %s7, 0
    %p27 = por %p25, %p26
    %p28 = scmp.ne.s32.totalorder %s17, %s20
    %p29 = scmp.eq.s32.totalorder %s12, 3
    %p30 = por %p28, %p29
    %p31 = scmp.ne.s32.totalorder %s20, %s21
    %p32 = scmp.eq.s32.totalorder %s12, 0
    %p33 = por %p31, %p32
    %p34 = scmp.ne.s32.totalorder %s20, %s21
    %p35 = scmp.eq.s32.totalorder %s13, 3
    %p36 = por %p34, %p35
    %p38 = scmp.ne.s32.totalorder %s21, %s37
    %p39 = scmp.eq.s32.totalorder %s13, 0
    %p40 = por %p38, %p39
    %s41 = ssub.s32 %s7, %s14
    %p42 = scmp.eq.s32.totalorder %s41, 0
    %s44 = sadd.s32 %s43, 1
    %s45 = scalar_select %p42, %s43, %s44
    %p48 = pneg %p42
    %p49 = scmp.eq.s32.totalorder %s7, 3
    %p50 = por %p48, %p49
    %p51 = scmp.ne.s32.totalorder %s43, %s46
    %p52 = scmp.eq.s32.totalorder %s7, 0
    %p53 = por %p51, %p52
    %p54 = scmp.ne.s32.totalorder %s43, %s46
    %p55 = scmp.eq.s32.totalorder %s12, 3
    %p56 = por %p54, %p55
    %p57 = scmp.ne.s32.totalorder %s46, %s47
    %p58 = scmp.eq.s32.totalorder %s12, 0
    %p59 = por %p57, %p58
    %p60 = scmp.ne.s32.totalorder %s46, %s47
    %p61 = scmp.eq.s32.totalorder %s13, 3
    %p62 = por %p60, %p61
    %p64 = scmp.ne.s32.totalorder %s47, %s63
    %p65 = scmp.eq.s32.totalorder %s13, 0
    %p66 = por %p64, %p65
    %p67 = scmp.le.s32.totalorder 1, %s7
    %p68 = scmp.lt.s32.totalorder %s7, 5
    %p69 = pnand %p67, %p68
    %p70 = pneg %p69
    // Predicated region
    $region9: #{fsim.4} parent=5 // pred_check
      _
    $region10: #{fsim.4} parent=5 // pred_check_branch
      %72 = sbr.rel (%p69) target = $region12
    $region11: #{fsim.4} parent=5 // pred_region
      %s73 = ssub.s32 %s7, 1
    $region12: #{fsim.4} parent=5 // pred_fallthru
      _
    %p74 = scmp.lt.s32.totalorder %s7, 4
    // Predicated region
    $region13: #{fsim.4} parent=5 // pred_check
      %p75 = pneg %p74
    $region14: #{fsim.4} parent=5 // pred_check_branch
      %77 = sbr.rel (%p75) target = $region16
    $region15: #{fsim.4} parent=5 // pred_region
      // Predicated region
      $region17: #{fsim.4} parent=15 // pred_check
        %p78 = pneg %p27
      $region18: #{fsim.4} parent=15 // pred_check_branch
        %80 = sbr.rel (%p78) target = $region20
      $region19: #{fsim.4} parent=15 // pred_region
        %p81 = scmp.lt.s32.totalorder %s7, 3
        %s82 = scalar_select %p81, %s7, 3
        %s83 = smul.addr %s82, 6
        %s84 = smul.addr %s83, 8
        %s85 = scalar_lea.vmem %s0, %s84
      $region20: #{fsim.4} parent=15 // pred_fallthru
        _
    $region16: #{fsim.4} parent=5 // pred_fallthru
      _
    %p86 = scmp.le.s32.totalorder 1, %s7
    %p87 = scmp.lt.s32.totalorder %s7, 5
    %p88 = pnand %p86, %p87
    %p89 = pneg %p88
    // Predicated region
    $region21: #{fsim.4} parent=5 // pred_check
      _
    $region22: #{fsim.4} parent=5 // pred_check_branch
      %91 = sbr.rel (%p88) target = $region24
    $region23: #{fsim.4} parent=5 // pred_region
      %s92 = ssub.s32 %s7, 1
      %p93 = scmp.lt.s32.totalorder %s12, 3
      %s94 = scalar_select %p93, %s12, 3
      %s95 = smul.addr %s94, 6
      %s96 = smul.addr %s95, 8
      %s97 = scalar_lea.vmem %s0, %s96
      %p98 = pneg %p33
      %p99 = pneg %p30
      %p100 = pneg %p59
      %p101 = pneg %p56
      %p102 = scmp.lt.s32.totalorder %s12, 3
      %s103 = scalar_select %p102, %s12, 3
      %s104 = smul.addr %s103, 2
      %s105 = smul.addr %s104, 8
      %s106 = scalar_lea.vmem %s1, %s105
      %p107 = scmp.lt.s32.totalorder %s12, 3
      %s108 = scalar_select %p107, %s12, 3
      %s109 = smul.addr %s108, 6
      %s110 = smul.addr %s109, 8
      %s111 = scalar_lea.vmem %s0, %s110
      %p112 = scmp.lt.s32.totalorder %s12, 3
      %s113 = scalar_select %p112, %s12, 3
      %s114 = smul.addr %s113, 2
      %s115 = smul.addr %s114, 8
      %s116 = scalar_lea.vmem %s1, %s115
      %v117 = vld [vmem:[%s111] sm:$0xff]
      %v118 = vld [vmem:[%s111 + $0x8] sm:$0xff]
      %s119 = scalar_lea.vmem %s111, 16
      %v120 = vld [vmem:[%s119] sm:$0xff]
      %v121 = vld [vmem:[%s119 + $0x8] sm:$0xff]
      %s122 = scalar_lea.vmem %s111, 32
      %v123 = vld [vmem:[%s122] sm:$0xff]
      %v124 = vld [vmem:[%s122 + $0x8] sm:$0xff]
      %v125 = vmul.f32 %v117, 0.299
      %v126 = vmul.f32 %v118, 0.299
      %v127 = vmul.f32 %v120, 0.587
      %v128 = vmul.f32 %v121, 0.587
      %v129 = vadd.f32 %v125, %v127
      %v130 = vadd.f32 %v126, %v128
      %v131 = vmul.f32 %v123, 0.114
      %v132 = vmul.f32 %v124, 0.114
      %v133 = vadd.f32 %v129, %v131
      %v134 = vadd.f32 %v130, %v132
      %vm135 = vcmask 130048
      %136 = vst.msk [vmem:[%s116] sm:$0xff] %vm135, %v133
      %137 = vst.msk [vmem:[%s116 + $0x8] sm:$0xff] %vm135, %v134
      %p138 = scmp.lt.s32.totalorder %s12, 3
      %s139 = scalar_select %p138, %s12, 3
      %s140 = smul.addr %s139, 2
      %s141 = smul.addr %s140, 8
      %s142 = scalar_lea.vmem %s1, %s141
      // Predicated region
      $region25: #{fsim.4} parent=23 // pred_check
        %p143 = pneg %p56
      $region26: #{fsim.4} parent=23 // pred_check_branch
        %145 = sbr.rel (%p143) target = $region28
      $region27: #{fsim.4} parent=23 // pred_region
        _
      $region28: #{fsim.4} parent=23 // pred_fallthru
        _
    $region24: #{fsim.4} parent=5 // pred_fallthru
      _
    %p146 = scmp.le.s32.totalorder 2, %s7
    // Predicated region
    $region29: #{fsim.4} parent=5 // pred_check
      %p147 = pneg %p146
    $region30: #{fsim.4} parent=5 // pred_check_branch
      %149 = sbr.rel (%p147) target = $region32
    $region31: #{fsim.4} parent=5 // pred_region
      %s150 = ssub.s32 %s7, 2
      // Predicated region
      $region33: #{fsim.4} parent=31 // pred_check
        %p151 = pneg %p62
      $region34: #{fsim.4} parent=31 // pred_check_branch
        %153 = sbr.rel (%p151) target = $region36
      $region35: #{fsim.4} parent=31 // pred_region
        %p154 = scmp.lt.s32.totalorder %s13, 3
        %s155 = scalar_select %p154, %s13, 3
        %s156 = smul.addr %s155, 2
        %s157 = smul.addr %s156, 8
        %s158 = scalar_lea.vmem %s1, %s157
      $region36: #{fsim.4} parent=31 // pred_fallthru
        _
    $region32: #{fsim.4} parent=5 // pred_fallthru
      _
  $region6: #{fsim.4} parent=0 // loop_footer
    %s11 = sadd.s32 1, %s7
  $region7: #{fsim.4} parent=0 // loop_footer_branch
    %6 = sbr.rel target = $region3
  $region8: #{fsim.4} parent=0 // loop_exit
    _

// kernel: fsim.6
$region0: #{fsim.6}
  #allocation0 [shape = 'u32[]', space=smem, size = 0x4, offset = 0x4, fixed_abs, tag = 'smem constant byte address 0x4 - core index']
  #allocation1 [shape = 'u32[144,128]{1,0:T(1,128)}', space=vmem, size = 0x12000, scoped, tag = 'internal scratch']
  %s0 = inlined_call_operand.vmem [shape: f32[4,1,18,18], index: 0, kind: input, shape index: {}]
  %s1 = inlined_call_operand.vmem [shape: f32[4,1,16,16], index: 1, kind: output, shape index: {}]
  %s2 = sld [smem:[#allocation0]]
  $region37: #{fsim.6} parent=0
    _
  %s4 = ssub.s32 1, %s2
  %s5 = scalar_select 0, %s4, %s2
  loop: start=0, step=1, limit=6
  $region2: #{fsim.6} parent=0 // loop_pre_header
    _
  $region3: #{fsim.6} parent=0 // loop_header
    %s7 = sphi 0, %s11
    %p8 = scmp.ge.s32.totalorder %s7, 6
    %s17 = sphi 0, %s19
    %s20 = sphi 0, %s17
    %s21 = sphi 0, %s20
    %s37 = sphi 0, %s21
    %s43 = sphi 0, %s45
    %s46 = sphi 0, %s43
    %s47 = sphi 0, %s46
    %s63 = sphi 0, %s47
  $region4: #{fsim.6} parent=0 // loop_header_branch
    %10 = sbr.rel (%p8) target = $region8
  $region5: #{fsim.6} parent=0 // loop_body
    %s12 = ssub.s32 %s7, 1
    %s13 = ssub.s32 %s7, 2
    %s14 = sadd.s32 %s7, 1
    %s15 = ssub.s32 %s7, %s14
    %p16 = scmp.eq.s32.totalorder %s15, 0
    %s18 = sadd.s32 %s17, 1
    %s19 = scalar_select %p16, %s17, %s18
    %p22 = pneg %p16
    %p23 = scmp.eq.s32.totalorder %s7, 3
    %p24 = por %p22, %p23
    %p25 = scmp.ne.s32.totalorder %s17, %s20
    %p26 = scmp.eq.s32.totalorder %s7, 0
    %p27 = por %p25, %p26
    %p28 = scmp.ne.s32.totalorder %s17, %s20
    %p29 = scmp.eq.s32.totalorder %s12, 3
    %p30 = por %p28, %p29
    %p31 = scmp.ne.s32.totalorder %s20, %s21
    %p32 = scmp.eq.s32.totalorder %s12, 0
    %p33 = por %p31, %p32
    %p34 = scmp.ne.s32.totalorder %s20, %s21
    %p35 = scmp.eq.s32.totalorder %s13, 3
    %p36 = por %p34, %p35
    %p38 = scmp.ne.s32.totalorder %s21, %s37
    %p39 = scmp.eq.s32.totalorder %s13, 0
    %p40 = por %p38, %p39
    %s41 = ssub.s32 %s7, %s14
    %p42 = scmp.eq.s32.totalorder %s41, 0
    %s44 = sadd.s32 %s43, 1
    %s45 = scalar_select %p42, %s43, %s44
    %p48 = pneg %p42
    %p49 = scmp.eq.s32.totalorder %s7, 3
    %p50 = por %p48, %p49
    %p51 = scmp.ne.s32.totalorder %s43, %s46
    %p52 = scmp.eq.s32.totalorder %s7, 0
    %p53 = por %p51, %p52
    %p54 = scmp.ne.s32.totalorder %s43, %s46
    %p55 = scmp.eq.s32.totalorder %s12, 3
    %p56 = por %p54, %p55
    %p57 = scmp.ne.s32.totalorder %s46, %s47
    %p58 = scmp.eq.s32.totalorder %s12, 0
    %p59 = por %p57, %p58
    %p60 = scmp.ne.s32.totalorder %s46, %s47
    %p61 = scmp.eq.s32.totalorder %s13, 3
    %p62 = por %p60, %p61
    %p64 = scmp.ne.s32.totalorder %s47, %s63
    %p65 = scmp.eq.s32.totalorder %s13, 0
    %p66 = por %p64, %p65
    %p67 = scmp.le.s32.totalorder 1, %s7
    %p68 = scmp.lt.s32.totalorder %s7, 5
    %p69 = pnand %p67, %p68
    %p70 = pneg %p69
    // Predicated region
    $region9: #{fsim.6} parent=5 // pred_check
      _
    $region10: #{fsim.6} parent=5 // pred_check_branch
      %72 = sbr.rel (%p69) target = $region12
    $region11: #{fsim.6} parent=5 // pred_region
      %s73 = ssub.s32 %s7, 1
    $region12: #{fsim.6} parent=5 // pred_fallthru
      _
    %p74 = scmp.lt.s32.totalorder %s7, 4
    // Predicated region
    $region13: #{fsim.6} parent=5 // pred_check
      %p75 = pneg %p74
    $region14: #{fsim.6} parent=5 // pred_check_branch
      %77 = sbr.rel (%p75) target = $region16
    $region15: #{fsim.6} parent=5 // pred_region
      // Predicated region
      $region17: #{fsim.6} parent=15 // pred_check
        %p78 = pneg %p27
      $region18: #{fsim.6} parent=15 // pred_check_branch
        %80 = sbr.rel (%p78) target = $region20
      $region19: #{fsim.6} parent=15 // pred_region
        %p81 = scmp.lt.s32.totalorder %s7, 3
        %s82 = scalar_select %p81, %s7, 3
        %s83 = smul.addr %s82, 3
        %s84 = smul.addr %s83, 8
        %s85 = scalar_lea.vmem %s0, %s84
      $region20: #{fsim.6} parent=15 // pred_fallthru
        _
    $region16: #{fsim.6} parent=5 // pred_fallthru
      _
    %p86 = scmp.le.s32.totalorder 1, %s7
    %p87 = scmp.lt.s32.totalorder %s7, 5
    %p88 = pnand %p86, %p87
    %p89 = pneg %p88
    // Predicated region
    $region21: #{fsim.6} parent=5 // pred_check
      _
    $region22: #{fsim.6} parent=5 // pred_check_branch
      %91 = sbr.rel (%p88) target = $region24
    $region23: #{fsim.6} parent=5 // pred_region
      %s92 = ssub.s32 %s7, 1
      %p93 = scmp.lt.s32.totalorder %s12, 3
      %s94 = scalar_select %p93, %s12, 3
      %s95 = smul.addr %s94, 3
      %s96 = smul.addr %s95, 8
      %s97 = scalar_lea.vmem %s0, %s96
      %p98 = pneg %p33
      %p99 = pneg %p30
      %p100 = pneg %p59
      %p101 = pneg %p56
      %p102 = scmp.lt.s32.totalorder %s12, 3
      %s103 = scalar_select %p102, %s12, 3
      %s104 = smul.addr %s103, 2
      %s105 = smul.addr %s104, 8
      %s106 = scalar_lea.vmem %s1, %s105
      %p107 = scmp.lt.s32.totalorder %s12, 3
      %s108 = scalar_select %p107, %s12, 3
      %s109 = smul.addr %s108, 3
      %s110 = smul.addr %s109, 8
      %s111 = scalar_lea.vmem %s0, %s110
      %p112 = scmp.lt.s32.totalorder %s12, 3
      %s113 = scalar_select %p112, %s12, 3
      %s114 = smul.addr %s113, 2
      %s115 = smul.addr %s114, 8
      %s116 = scalar_lea.vmem %s1, %s115
      %v117 = vld [vmem:[%s111] sm:$0xff]
      %v118 = vld [vmem:[%s111 + $0x8] sm:$0xff]
      %v119 = vld [vmem:[%s111 + $0x1] sm:$0xff]
      %v120 = vld [vmem:[%s111 + $0x9] sm:$0xff]
      %v121 = vld [vmem:[%s111 + $0x2] sm:$0xff]
      %v122 = vld [vmem:[%s111 + $0xa] sm:$0xff]
      %v123 = vadd.f32 %v117, %v121
      %v124 = vadd.f32 %v118, %v122
      %v125 = vmul.f32 %v123, 3.0
      %v126 = vmul.f32 %v124, 3.0
      %v127 = vmul.f32 %v119, 10.0
      %v128 = vmul.f32 %v120, 10.0
      %v129 = vadd.f32 %v125, %v127
      %v130 = vadd.f32 %v126, %v128
      %v131 = vsub.f32 %v121, %v117
      %v132 = vsub.f32 %v122, %v118
      %135 = vrot.lane.b32.xlu0 %v129, 2
      %v136 = vpop.permute.xlu0 %135
      %137 = vrot.lane.b32.xlu0 %v130, 2
      %v138 = vpop.permute.xlu0 %137
      %v141 = vsub.f32 %v129, %v136
      %v142 = vsub.f32 %v130, %v138
      %v143 = vmul.f32 %v141, 0.0625
      %v144 = vmul.f32 %v142, 0.0625
      %147 = vrot.lane.b32.xlu0 %v131, 126
      %v148 = vpop.permute.xlu0 %147
      %149 = vrot.lane.b32.xlu0 %v132, 126
      %v150 = vpop.permute.xlu0 %149
      %v153 = vadd.f32 %v131, %v148
      %v154 = vadd.f32 %v132, %v150
      %v155 = vmul.f32 %v153, 3.0
      %v156 = vmul.f32 %v154, 3.0
      %v157 = vmul.f32 %v131, 10.0
      %v158 = vmul.f32 %v132, 10.0
      %161 = vrot.lane.b32.xlu0 %v157, 127
      %v162 = vpop.permute.xlu0 %161
      %163 = vrot.lane.b32.xlu0 %v158, 127
      %v164 = vpop.permute.xlu0 %163
      %v167 = vadd.f32 %v155, %v162
      %v168 = vadd.f32 %v156, %v164
      %v169 = vmul.f32 %v167, 0.0625
      %v170 = vmul.f32 %v168, 0.0625
      %v171 = vmul.f32 %v143, %v143
      %v172 = vmul.f32 %v144, %v144
      %v173 = vmul.f32 %v169, %v169
      %v174 = vmul.f32 %v170, %v170
      %177 = vrot.lane.b32.xlu0 %v173, 2
      %v178 = vpop.permute.xlu0 %177
      %179 = vrot.lane.b32.xlu0 %v174, 2
      %v180 = vpop.permute.xlu0 %179
      %v183 = vadd.f32 %v171, %v178
      %v184 = vadd.f32 %v172, %v180
      %v185 = vrsqrt.pop %v183
      %v186 = vmul.f32 %v183, %v185
      %vm187 = vcmp.eq.f32.partialorder %v183, inf
      %v188 = vsel %vm187, %v183, %v186
      %vm189 = vcmp.eq.f32.partialorder %v183, 0.0
      %v190 = vand.u32 %v183, 2147483648
      %v191 = vsel %vm189, %v190, %v188
      %v192 = vrsqrt.pop %v184
      %v193 = vmul.f32 %v184, %v192
      %vm194 = vcmp.eq.f32.partialorder %v184, inf
      %v195 = vsel %vm194, %v184, %v193
      %vm196 = vcmp.eq.f32.partialorder %v184, 0.0
      %v197 = vand.u32 %v184, 2147483648
      %v198 = vsel %vm196, %v197, %v195
      %201 = vrot.lane.b32.xlu0 %v191, 126
      %v202 = vpop.permute.xlu0 %201
      %203 = vrot.lane.b32.xlu0 %v198, 126
      %v204 = vpop.permute.xlu0 %203
      %vm207 = vcmask 130048
      %208 = vst.msk [vmem:[%s116] sm:$0xff] %vm207, %v202
      %209 = vst.msk [vmem:[%s116 + $0x8] sm:$0xff] %vm207, %v204
      %p210 = scmp.lt.s32.totalorder %s12, 3
      %s211 = scalar_select %p210, %s12, 3
      %s212 = smul.addr %s211, 2
      %s213 = smul.addr %s212, 8
      %s214 = scalar_lea.vmem %s1, %s213
      // Predicated region
      $region25: #{fsim.6} parent=23 // pred_check
        %p215 = pneg %p56
      $region26: #{fsim.6} parent=23 // pred_check_branch
        %217 = sbr.rel (%p215) target = $region28
      $region27: #{fsim.6} parent=23 // pred_region
        _
      $region28: #{fsim.6} parent=23 // pred_fallthru
        _
    $region24: #{fsim.6} parent=5 // pred_fallthru
      _
    %p218 = scmp.le.s32.totalorder 2, %s7
    // Predicated region
    $region29: #{fsim.6} parent=5 // pred_check
      %p219 = pneg %p218
    $region30: #{fsim.6} parent=5 // pred_check_branch
      %221 = sbr.rel (%p219) target = $region32
    $region31: #{fsim.6} parent=5 // pred_region
      %s222 = ssub.s32 %s7, 2
      // Predicated region
      $region33: #{fsim.6} parent=31 // pred_check
        %p223 = pneg %p62
      $region34: #{fsim.6} parent=31 // pred_check_branch
        %225 = sbr.rel (%p223) target = $region36
      $region35: #{fsim.6} parent=31 // pred_region
        %p226 = scmp.lt.s32.totalorder %s13, 3
        %s227 = scalar_select %p226, %s13, 3
        %s228 = smul.addr %s227, 2
        %s229 = smul.addr %s228, 8
        %s230 = scalar_lea.vmem %s1, %s229
      $region36: #{fsim.6} parent=31 // pred_fallthru
        _
    $region32: #{fsim.6} parent=5 // pred_fallthru
      _
  $region6: #{fsim.6} parent=0 // loop_footer
    %s11 = sadd.s32 1, %s7
  $region7: #{fsim.6} parent=0 // loop_footer_branch
    %6 = sbr.rel target = $region3
  $region8: #{fsim.6} parent=0 // loop_exit
    _

// kernel: fsim.5
$region0: #{fsim.5}
  #allocation0 [shape = 'u32[]', space=smem, size = 0x4, offset = 0x4, fixed_abs, tag = 'smem constant byte address 0x4 - core index']
  #allocation1 [shape = 'u32[144,128]{1,0:T(1,128)}', space=vmem, size = 0x12000, scoped, tag = 'internal scratch']
  %s0 = inlined_call_operand.vmem [shape: f32[4,4,4,16,16], index: 0, kind: input, shape index: {}]
  %s1 = inlined_call_operand.vmem [shape: f32[4,4,4,16,16], index: 1, kind: input, shape index: {}]
  %s2 = inlined_call_operand.vmem [shape: f32[4,4,16,16], index: 2, kind: output, shape index: {0}]
  %s3 = inlined_call_operand.vmem [shape: f32[4,4,16,16], index: 3, kind: output, shape index: {1}]
  %4 = xla_tuple %s2, %s3
  %s5 = sld [smem:[#allocation0]]
  $region125: #{fsim.5} parent=0
    _
  %s7 = ssub.s32 1, %s5
  %s8 = scalar_select 0, %s7, %s5
  $region1: #{fsim.5} parent=0
    #allocation2 [shape = 'u8[65536]{0}', space=vmem, size = 0x10000, scoped, tag = 'input window, operand 0']
    #allocation3 [shape = 'u8[65536]{0}', space=vmem, size = 0x10000, scoped, tag = 'input window, operand 1']
    loop: start=0, step=1, limit=18
    $region2: #{fsim.5} parent=1 // loop_pre_header
      _
    $region3: #{fsim.5} parent=1 // loop_header
      %s10 = sphi 0, %s14
      %p11 = scmp.ge.s32.totalorder %s10, 18
      %s17 = sphi 0, %s29
      %s18 = sphi 0, %s25
      %s19 = sphi 0, %s17
      %s20 = sphi 0, %s18
      %s21 = sphi 0, %s19
      %s22 = sphi 0, %s20
      %s34 = sphi 0, %s36
      %s37 = sphi 0, %s34
      %s38 = sphi 0, %s37
      %s54 = sphi 0, %s38
      %s62 = sphi 0, %s64
      %s65 = sphi 0, %s62
      %s66 = sphi 0, %s65
      %s82 = sphi 0, %s66
      %s90 = sphi 0, %s92
      %s93 = sphi 0, %s90
      %s94 = sphi 0, %s93
      %s110 = sphi 0, %s94
      %s118 = sphi 0, %s120
      %s121 = sphi 0, %s118
      %s122 = sphi 0, %s121
      %s138 = sphi 0, %s122
    $region4: #{fsim.5} parent=1 // loop_header_branch
      %13 = sbr.rel (%p11) target = $region8
    $region5: #{fsim.5} parent=1 // loop_body
      %s15 = ssub.s32 %s10, 1
      %s16 = ssub.s32 %s10, 2
      %s23 = sadd.s32 1, %s18
      %p24 = scmp.ge.s32.totalorder %s23, 4
      %s25 = scalar_select %p24, 0, %s23
      %s26 = sadd.s32 1, %s17
      %s27 = scalar_select %p24, %s26, %s17
      %p28 = scmp.ge.s32.totalorder %s27, 4
      %s29 = scalar_select %p28, 0, %s27
      %s30 = ssub.s32 %s17, %s29
      %s31 = ssub.s32 %s18, %s25
      %s32 = sor.u32 %s30, %s31
      %p33 = scmp.eq.s32.totalorder %s32, 0
      %s35 = sadd.s32 %s34, 1
      %s36 = scalar_select %p33, %s34, %s35
      %p39 = pneg %p33
      %p40 = scmp.eq.s32.totalorder %s10, 15
      %p41 = por %p39, %p40
      %p42 = scmp.ne.s32.totalorder %s34, %s37
      %p43 = scmp.eq.s32.totalorder %s10, 0
      %p44 = por %p42, %p43
      %p45 = scmp.ne.s32.totalorder %s34, %s37
      %p46 = scmp.eq.s32.totalorder %s15, 15
      %p47 = por %p45, %p46
      %p48 = scmp.ne.s32.totalorder %s37, %s38
      %p49 = scmp.eq.s32.totalorder %s15, 0
      %p50 = por %p48, %p49
      %p51 = scmp.ne.s32.totalorder %s37, %s38
      %p52 = scmp.eq.s32.totalorder %s16, 15
      %p53 = por %p51, %p52
      %p55 = scmp.ne.s32.totalorder %s38, %s54
      %p56 = scmp.eq.s32.totalorder %s16, 0
      %p57 = por %p55, %p56
      %s58 = ssub.s32 %s17, %s29
      %s59 = ssub.s32 %s18, %s25
      %s60 = sor.u32 %s58, %s59
      %p61 = scmp.eq.s32.totalorder %s60, 0
      %s63 = sadd.s32 %s62, 1
      %s64 = scalar_select %p61, %s62, %s63
      %p67 = pneg %p61
      %p68 = scmp.eq.s32.totalorder %s10, 15
      %p69 = por %p67, %p68
      %p70 = scmp.ne.s32.totalorder %s62, %s65
      %p71 = scmp.eq.s32.totalorder %s10, 0
      %p72 = por %p70, %p71
      %p73 = scmp.ne.s32.totalorder %s62, %s65
      %p74 = scmp.eq.s32.totalorder %s15, 15
      %p75 = por %p73, %p74
      %p76 = scmp.ne.s32.totalorder %s65, %s66
      %p77 = scmp.eq.s32.totalorder %s15, 0
      %p78 = por %p76, %p77
      %p79 = scmp.ne.s32.totalorder %s65, %s66
      %p80 = scmp.eq.s32.totalorder %s16, 15
      %p81 = por %p79, %p80
      %p83 = scmp.ne.s32.totalorder %s66, %s82
      %p84 = scmp.eq.s32.totalorder %s16, 0
      %p85 = por %p83, %p84
      %s86 = ssub.s32 %s17, %s29
      %s87 = ssub.s32 %s18, %s25
      %s88 = sor.u32 %s86, %s87
      %p89 = scmp.eq.s32.totalorder %s88, 0
      %s91 = sadd.s32 %s90, 1
      %s92 = scalar_select %p89, %s90, %s91
      %p95 = pneg %p89
      %p96 = scmp.eq.s32.totalorder %s10, 15
      %p97 = por %p95, %p96
      %p98 = scmp.ne.s32.totalorder %s90, %s93
      %p99 = scmp.eq.s32.totalorder %s10, 0
      %p100 = por %p98, %p99
      %p101 = scmp.ne.s32.totalorder %s90, %s93
      %p102 = scmp.eq.s32.totalorder %s15, 15
      %p103 = por %p101, %p102
      %p104 = scmp.ne.s32.totalorder %s93, %s94
      %p105 = scmp.eq.s32.totalorder %s15, 0
      %p106 = por %p104, %p105
      %p107 = scmp.ne.s32.totalorder %s93, %s94
      %p108 = scmp.eq.s32.totalorder %s16, 15
      %p109 = por %p107, %p108
      %p111 = scmp.ne.s32.totalorder %s94, %s110
      %p112 = scmp.eq.s32.totalorder %s16, 0
      %p113 = por %p111, %p112
      %s114 = ssub.s32 %s17, %s29
      %s115 = ssub.s32 %s18, %s25
      %s116 = sor.u32 %s114, %s115
      %p117 = scmp.eq.s32.totalorder %s116, 0
      %s119 = sadd.s32 %s118, 1
      %s120 = scalar_select %p117, %s118, %s119
      %p123 = pneg %p117
      %p124 = scmp.eq.s32.totalorder %s10, 15
      %p125 = por %p123, %p124
      %p126 = scmp.ne.s32.totalorder %s118, %s121
      %p127 = scmp.eq.s32.totalorder %s10, 0
      %p128 = por %p126, %p127
      %p129 = scmp.ne.s32.totalorder %s118, %s121
      %p130 = scmp.eq.s32.totalorder %s15, 15
      %p131 = por %p129, %p130
      %p132 = scmp.ne.s32.totalorder %s121, %s122
      %p133 = scmp.eq.s32.totalorder %s15, 0
      %p134 = por %p132, %p133
      %p135 = scmp.ne.s32.totalorder %s121, %s122
      %p136 = scmp.eq.s32.totalorder %s16, 15
      %p137 = por %p135, %p136
      %p139 = scmp.ne.s32.totalorder %s122, %s138
      %p140 = scmp.eq.s32.totalorder %s16, 0
      %p141 = por %p139, %p140
      %p142 = scmp.le.s32.totalorder 1, %s10
      %p143 = scmp.lt.s32.totalorder %s10, 17
      %p144 = pnand %p142, %p143
      %p145 = pneg %p144
      // Predicated region
      $region9: #{fsim.5} parent=5 // pred_check
        _
      $region10: #{fsim.5} parent=5 // pred_check_branch
        %147 = sbr.rel (%p144) target = $region12
      $region11: #{fsim.5} parent=5 // pred_region
        %s148 = ssub.s32 %s10, 1
      $region12: #{fsim.5} parent=5 // pred_fallthru
        _
      %p149 = scmp.lt.s32.totalorder %s10, 16
      // Predicated region
      $region13: #{fsim.5} parent=5 // pred_check
        %p150 = pneg %p149
      $region14: #{fsim.5} parent=5 // pred_check_branch
        %152 = sbr.rel (%p150) target = $region16
      $region15: #{fsim.5} parent=5 // pred_region
        // Predicated region
        $region17: #{fsim.5} parent=15 // pred_check
          %p153 = pneg %p44
        $region18: #{fsim.5} parent=15 // pred_check_branch
          %155 = sbr.rel (%p153) target = $region20
        $region19: #{fsim.5} parent=15 // pred_region
          %s156 = sand.u32 %s34, 1
          %s157 = sand.u32 %s34, 1
          %s158 = smul.addr %s157, 64
          %s159 = scalar_lea.vmem [#allocation2], %s158
          %s160 = smul.addr %s18, 2
          %s161 = smul.addr %s17, 32
          %s162 = sadd.s32 %s160, %s161
          %s163 = smul.addr %s162, 8
          %s164 = scalar_lea.vmem %s0, %s163
          // Predicated region
          $region21: #{fsim.5} parent=19 // pred_check
            _
          $region22: #{fsim.5} parent=19 // pred_check_branch
            %166 = sbr.rel (0) target = $region24
          $region23: #{fsim.5} parent=19 // pred_region
            // Predicated region
            $region25: #{fsim.5} parent=23 // pred_check
              _
            $region26: #{fsim.5} parent=23 // pred_check_branch
              %168 = sbr.rel (0) target = $region28
            $region27: #{fsim.5} parent=23 // pred_region
              // Predicated region
              $region40: #{fsim.5} parent=27 // pred_check
                _
              $region41: #{fsim.5} parent=27 // pred_check_branch
                %198 = sbr.rel (0) target = $region43
              $region42: #{fsim.5} parent=27 // pred_region
                loop: start=0, step=1, limit=1
                $region44: #{fsim.5} parent=42 // loop_pre_header
                  _
                $region45: #{fsim.5} parent=42 // loop_header
                  %s200 = sphi 0, %s204
                  %p201 = scmp.ge.s32.totalorder %s200, 1
                  %s205 = sphi %s164, %s164
                  %s206 = sphi %s159, %s159
                $region46: #{fsim.5} parent=42 // loop_header_branch
                  %203 = sbr.rel (%p201) target = $region50
                $region47: #{fsim.5} parent=42 // loop_body
                  %v207 = vld [vmem:[%s205] sm:$0xff]
                  %208 = vst [vmem:[%s206] sm:$0xff] %v207
                  %v209 = vld [vmem:[%s205 + $0x8] sm:$0xff]
                  %210 = vst [vmem:[%s206 + $0x8] sm:$0xff] %v209
                  %v211 = vld [vmem:[%s205 + $0x40] sm:$0xff]
                  %212 = vst [vmem:[%s206 + $0x10] sm:$0xff] %v211
                  %v213 = vld [vmem:[%s205 + $0x48] sm:$0xff]
                  %214 = vst [vmem:[%s206 + $0x18] sm:$0xff] %v213
                  %v215 = vld [vmem:[%s205 + $0x80] sm:$0xff]
                  %216 = vst [vmem:[%s206 + $0x20] sm:$0xff] %v215
                  %v217 = vld [vmem:[%s205 + $0x88] sm:$0xff]
                  %218 = vst [vmem:[%s206 + $0x28] sm:$0xff] %v217
                  %v219 = vld [vmem:[%s205 + $0xc0] sm:$0xff]
                  %220 = vst [vmem:[%s206 + $0x30] sm:$0xff] %v219
                  %v221 = vld [vmem:[%s205 + $0xc8] sm:$0xff]
                  %222 = vst [vmem:[%s206 + $0x38] sm:$0xff] %v221
                $region48: #{fsim.5} parent=42 // loop_footer
                  %s204 = sadd.s32 1, %s200
                $region49: #{fsim.5} parent=42 // loop_footer_branch
                  %199 = sbr.rel target = $region45
                $region50: #{fsim.5} parent=42 // loop_exit
                  _
              $region43: #{fsim.5} parent=27 // pred_fallthru
                _
              // Predicated region
              $region51: #{fsim.5} parent=27 // pred_check
                _
              $region52: #{fsim.5} parent=27 // pred_check_branch
                %224 = sbr.rel target = $region54
              $region53: #{fsim.5} parent=27 // pred_region
                _
              $region54: #{fsim.5} parent=27 // pred_fallthru
                _
            $region28: #{fsim.5} parent=23 // pred_fallthru
              _
            // Predicated region
            $region29: #{fsim.5} parent=23 // pred_check
              _
            $region30: #{fsim.5} parent=23 // pred_check_branch
              %170 = sbr.rel target = $region32
            $region31: #{fsim.5} parent=23 // pred_region
              %s172 = ssub.s32 256, 1
              loop: start=0, step=1, limit=1
              $region33: #{fsim.5} parent=31 // loop_pre_header
                _
              $region34: #{fsim.5} parent=31 // loop_header
                %s174 = sphi 0, %s178
                %p175 = scmp.ge.s32.totalorder %s174, 1
                %s179 = sphi %s164, %s164
                %s180 = sphi %s159, %s159
              $region35: #{fsim.5} parent=31 // loop_header_branch
                %177 = sbr.rel (%p175) target = $region39
              $region36: #{fsim.5} parent=31 // loop_body
                %v181 = vld [vmem:[%s179] sm:%s172]
                %182 = vst [vmem:[%s180] sm:%s172] %v181
                %v183 = vld [vmem:[%s179 + $0x8] sm:%s172]
                %184 = vst [vmem:[%s180 + $0x8] sm:%s172] %v183
                %v185 = vld [vmem:[%s179 + $0x40] sm:%s172]
                %186 = vst [vmem:[%s180 + $0x10] sm:%s172] %v185
                %v187 = vld [vmem:[%s179 + $0x48] sm:%s172]
                %188 = vst [vmem:[%s180 + $0x18] sm:%s172] %v187
                %v189 = vld [vmem:[%s179 + $0x80] sm:%s172]
                %190 = vst [vmem:[%s180 + $0x20] sm:%s172] %v189
                %v191 = vld [vmem:[%s179 + $0x88] sm:%s172]
                %192 = vst [vmem:[%s180 + $0x28] sm:%s172] %v191
                %v193 = vld [vmem:[%s179 + $0xc0] sm:%s172]
                %194 = vst [vmem:[%s180 + $0x30] sm:%s172] %v193
                %v195 = vld [vmem:[%s179 + $0xc8] sm:%s172]
                %196 = vst [vmem:[%s180 + $0x38] sm:%s172] %v195
              $region37: #{fsim.5} parent=31 // loop_footer
                %s178 = sadd.s32 1, %s174
              $region38: #{fsim.5} parent=31 // loop_footer_branch
                %173 = sbr.rel target = $region34
              $region39: #{fsim.5} parent=31 // loop_exit
                _
            $region32: #{fsim.5} parent=23 // pred_fallthru
              _
          $region24: #{fsim.5} parent=19 // pred_fallthru
            _
          %225 = vnop
        $region20: #{fsim.5} parent=15 // pred_fallthru
          _
        // Predicated region
        $region55: #{fsim.5} parent=15 // pred_check
          %p226 = pneg %p72
        $region56: #{fsim.5} parent=15 // pred_check_branch
          %228 = sbr.rel (%p226) target = $region58
        $region57: #{fsim.5} parent=15 // pred_region
          %s229 = sand.u32 %s62, 1
          %s230 = sand.u32 %s62, 1
          %s231 = smul.addr %s230, 64
          %s232 = scalar_lea.vmem [#allocation3], %s231
          %s233 = smul.addr %s18, 2
          %s234 = smul.addr %s17, 32
          %s235 = sadd.s32 %s233, %s234
          %s236 = smul.addr %s235, 8
          %s237 = scalar_lea.vmem %s1, %s236
          // Predicated region
          $region59: #{fsim.5} parent=57 // pred_check
            _
          $region60: #{fsim.5} parent=57 // pred_check_branch
            %239 = sbr.rel (0) target = $region62
          $region61: #{fsim.5} parent=57 // pred_region
            // Predicated region
            $region63: #{fsim.5} parent=61 // pred_check
              _
            $region64: #{fsim.5} parent=61 // pred_check_branch
              %241 = sbr.rel (0) target = $region66
            $region65: #{fsim.5} parent=61 // pred_region
              // Predicated region
              $region78: #{fsim.5} parent=65 // pred_check
                _
              $region79: #{fsim.5} parent=65 // pred_check_branch
                %271 = sbr.rel (0) target = $region81
              $region80: #{fsim.5} parent=65 // pred_region
                loop: start=0, step=1, limit=1
                $region82: #{fsim.5} parent=80 // loop_pre_header
                  _
                $region83: #{fsim.5} parent=80 // loop_header
                  %s273 = sphi 0, %s277
                  %p274 = scmp.ge.s32.totalorder %s273, 1
                  %s278 = sphi %s237, %s237
                  %s279 = sphi %s232, %s232
                $region84: #{fsim.5} parent=80 // loop_header_branch
                  %276 = sbr.rel (%p274) target = $region88
                $region85: #{fsim.5} parent=80 // loop_body
                  %v280 = vld [vmem:[%s278] sm:$0xff]
                  %281 = vst [vmem:[%s279] sm:$0xff] %v280
                  %v282 = vld [vmem:[%s278 + $0x8] sm:$0xff]
                  %283 = vst [vmem:[%s279 + $0x8] sm:$0xff] %v282
                  %v284 = vld [vmem:[%s278 + $0x40] sm:$0xff]
                  %285 = vst [vmem:[%s279 + $0x10] sm:$0xff] %v284
                  %v286 = vld [vmem:[%s278 + $0x48] sm:$0xff]
                  %287 = vst [vmem:[%s279 + $0x18] sm:$0xff] %v286
                  %v288 = vld [vmem:[%s278 + $0x80] sm:$0xff]
                  %289 = vst [vmem:[%s279 + $0x20] sm:$0xff] %v288
                  %v290 = vld [vmem:[%s278 + $0x88] sm:$0xff]
                  %291 = vst [vmem:[%s279 + $0x28] sm:$0xff] %v290
                  %v292 = vld [vmem:[%s278 + $0xc0] sm:$0xff]
                  %293 = vst [vmem:[%s279 + $0x30] sm:$0xff] %v292
                  %v294 = vld [vmem:[%s278 + $0xc8] sm:$0xff]
                  %295 = vst [vmem:[%s279 + $0x38] sm:$0xff] %v294
                $region86: #{fsim.5} parent=80 // loop_footer
                  %s277 = sadd.s32 1, %s273
                $region87: #{fsim.5} parent=80 // loop_footer_branch
                  %272 = sbr.rel target = $region83
                $region88: #{fsim.5} parent=80 // loop_exit
                  _
              $region81: #{fsim.5} parent=65 // pred_fallthru
                _
              // Predicated region
              $region89: #{fsim.5} parent=65 // pred_check
                _
              $region90: #{fsim.5} parent=65 // pred_check_branch
                %297 = sbr.rel target = $region92
              $region91: #{fsim.5} parent=65 // pred_region
                _
              $region92: #{fsim.5} parent=65 // pred_fallthru
                _
            $region66: #{fsim.5} parent=61 // pred_fallthru
              _
            // Predicated region
            $region67: #{fsim.5} parent=61 // pred_check
              _
            $region68: #{fsim.5} parent=61 // pred_check_branch
              %243 = sbr.rel target = $region70
            $region69: #{fsim.5} parent=61 // pred_region
              %s245 = ssub.s32 256, 1
              loop: start=0, step=1, limit=1
              $region71: #{fsim.5} parent=69 // loop_pre_header
                _
              $region72: #{fsim.5} parent=69 // loop_header
                %s247 = sphi 0, %s251
                %p248 = scmp.ge.s32.totalorder %s247, 1
                %s252 = sphi %s237, %s237
                %s253 = sphi %s232, %s232
              $region73: #{fsim.5} parent=69 // loop_header_branch
                %250 = sbr.rel (%p248) target = $region77
              $region74: #{fsim.5} parent=69 // loop_body
                %v254 = vld [vmem:[%s252] sm:%s245]
                %255 = vst [vmem:[%s253] sm:%s245] %v254
                %v256 = vld [vmem:[%s252 + $0x8] sm:%s245]
                %257 = vst [vmem:[%s253 + $0x8] sm:%s245] %v256
                %v258 = vld [vmem:[%s252 + $0x40] sm:%s245]
                %259 = vst [vmem:[%s253 + $0x10] sm:%s245] %v258
                %v260 = vld [vmem:[%s252 + $0x48] sm:%s245]
                %261 = vst [vmem:[%s253 + $0x18] sm:%s245] %v260
                %v262 = vld [vmem:[%s252 + $0x80] sm:%s245]
                %263 = vst [vmem:[%s253 + $0x20] sm:%s245] %v262
                %v264 = vld [vmem:[%s252 + $0x88] sm:%s245]
                %265 = vst [vmem:[%s253 + $0x28] sm:%s245] %v264
                %v266 = vld [vmem:[%s252 + $0xc0] sm:%s245]
                %267 = vst [vmem:[%s253 + $0x30] sm:%s245] %v266
                %v268 = vld [vmem:[%s252 + $0xc8] sm:%s245]
                %269 = vst [vmem:[%s253 + $0x38] sm:%s245] %v268
              $region75: #{fsim.5} parent=69 // loop_footer
                %s251 = sadd.s32 1, %s247
              $region76: #{fsim.5} parent=69 // loop_footer_branch
                %246 = sbr.rel target = $region72
              $region77: #{fsim.5} parent=69 // loop_exit
                _
            $region70: #{fsim.5} parent=61 // pred_fallthru
              _
          $region62: #{fsim.5} parent=57 // pred_fallthru
            _
          %298 = vnop
        $region58: #{fsim.5} parent=15 // pred_fallthru
          _
      $region16: #{fsim.5} parent=5 // pred_fallthru
        _
      %p299 = scmp.le.s32.totalorder 1, %s10
      %p300 = scmp.lt.s32.totalorder %s10, 17
      %p301 = pnand %p299, %p300
      %p302 = pneg %p301
      // Predicated region
      $region93: #{fsim.5} parent=5 // pred_check
        _
      $region94: #{fsim.5} parent=5 // pred_check_branch
        %304 = sbr.rel (%p301) target = $region96
      $region95: #{fsim.5} parent=5 // pred_region
        %s305 = ssub.s32 %s10, 1
        %s306 = sand.u32 %s37, 1
        %s307 = sand.u32 %s37, 1
        %s308 = smul.addr %s307, 64
        %s309 = scalar_lea.vmem [#allocation2], %s308
        // Predicated region
        $region97: #{fsim.5} parent=95 // pred_check
          %p310 = pneg %p50
        $region98: #{fsim.5} parent=95 // pred_check_branch
          %312 = sbr.rel (%p310) target = $region100
        $region99: #{fsim.5} parent=95 // pred_region
          _
        $region100: #{fsim.5} parent=95 // pred_fallthru
          _
        %s313 = sand.u32 %s65, 1
        %s314 = sand.u32 %s65, 1
        %s315 = smul.addr %s314, 64
        %s316 = scalar_lea.vmem [#allocation3], %s315
        // Predicated region
        $region101: #{fsim.5} parent=95 // pred_check
          %p317 = pneg %p78
        $region102: #{fsim.5} parent=95 // pred_check_branch
          %319 = sbr.rel (%p317) target = $region104
        $region103: #{fsim.5} parent=95 // pred_region
          _
        $region104: #{fsim.5} parent=95 // pred_fallthru
          _
        %s320 = sand.u32 %s37, 1
        %s321 = sand.u32 %s37, 1
        %s322 = smul.addr %s321, 64
        %s323 = scalar_lea.vmem [#allocation2], %s322
        %p324 = pneg %p50
        %p325 = pneg %p47
        %s326 = sand.u32 %s65, 1
        %s327 = sand.u32 %s65, 1
        %s328 = smul.addr %s327, 64
        %s329 = scalar_lea.vmem [#allocation3], %s328
        %p330 = pneg %p78
        %p331 = pneg %p75
        %p332 = pneg %p106
        %p333 = pneg %p103
        %p334 = scmp.lt.s32.totalorder %s19, 3
        %s335 = scalar_select %p334, %s19, 3
        %p336 = scmp.lt.s32.totalorder %s20, 3
        %s337 = scalar_select %p336, %s20, 3
        %s338 = smul.addr %s337, 2
        %s339 = smul.addr %s335, 8
        %s340 = sadd.s32 %s338, %s339
        %s341 = smul.addr %s340, 8
        %s342 = scalar_lea.vmem %s2, %s341
        %p343 = pneg %p134
        %p344 = pneg %p131
        %p345 = scmp.lt.s32.totalorder %s19, 3
        %s346 = scalar_select %p345, %s19, 3
        %p347 = scmp.lt.s32.totalorder %s20, 3
        %s348 = scalar_select %p347, %s20, 3
        %s349 = smul.addr %s348, 2
        %s350 = smul.addr %s346, 8
        %s351 = sadd.s32 %s349, %s350
        %s352 = smul.addr %s351, 8
        %s353 = scalar_lea.vmem %s3, %s352
        %p354 = scmp.lt.s32.totalorder %s19, 3
        %s355 = scalar_select %p354, %s19, 3
        %p356 = scmp.lt.s32.totalorder %s20, 3
        %s357 = scalar_select %p356, %s20, 3
        %s358 = smul.addr %s357, 2
        %s359 = smul.addr %s355, 8
        %s360 = sadd.s32 %s358, %s359
        %s361 = smul.addr %s360, 8
        %s362 = scalar_lea.vmem %s2, %s361
        %p363 = scmp.lt.s32.totalorder %s19, 3
        %s364 = scalar_select %p363, %s19, 3
        %p365 = scmp.lt.s32.totalorder %s20, 3
        %s366 = scalar_select %p365, %s20, 3
        %s367 = smul.addr %s366, 2
        %s368 = smul.addr %s364, 8
        %s369 = sadd.s32 %s367, %s368
        %s370 = smul.addr %s369, 8
        %s371 = scalar_lea.vmem %s3, %s370
        %v372 = vld [vmem:[%s309] sm:$0xff]
        %v373 = vld [vmem:[%s309 + $0x8] sm:$0xff]
        %v374 = vld [vmem:[%s316] sm:$0xff]
        %v375 = vld [vmem:[%s316 + $0x8] sm:$0xff]
        %v376 = vmul.f32 %v372, %v372
        %v377 = vmul.f32 %v373, %v373
        %v378 = vmul.f32 %v374, %v374
        %v379 = vmul.f32 %v375, %v375
        %v380 = vadd.f32 %v376, %v378
        %v381 = vadd.f32 %v377, %v379
        %v382 = vrsqrt.pop %v380
        %v383 = vmul.f32 %v380, %v382
        %vm384 = vcmp.eq.f32.partialorder %v380, inf
        %v385 = vsel %vm384, %v380, %v383
        %vm386 = vcmp.eq.f32.partialorder %v380, 0.0
        %v387 = vand.u32 %v380, 2147483648
        %v388 = vsel %vm386, %v387, %v385
        %v389 = vrsqrt.pop %v381
        %v390 = vmul.f32 %v381, %v389
        %vm391 = vcmp.eq.f32.partialorder %v381, inf
        %v392 = vsel %vm391, %v381, %v390
        %vm393 = vcmp.eq.f32.partialorder %v381, 0.0
        %v394 = vand.u32 %v381, 2147483648
        %v395 = vsel %vm393, %v394, %v392
        %s396 = scalar_lea.vmem %s309, 16 [#allocation2]
        %v397 = vld [vmem:[%s396] sm:$0xff]
        %v398 = vld [vmem:[%s396 + $0x8] sm:$0xff]
        %s399 = scalar_lea.vmem %s316, 16 [#allocation3]
        %v400 = vld [vmem:[%s399] sm:$0xff]
        %v401 = vld [vmem:[%s399 + $0x8] sm:$0xff]
        %v402 = vmul.f32 %v397, %v397
        %v403 = vmul.f32 %v398, %v398
        %v404 = vmul.f32 %v400, %v400
        %v405 = vmul.f32 %v401, %v401
        %v406 = vadd.f32 %v402, %v404
        %v407 = vadd.f32 %v403, %v405
        %v408 = vrsqrt.pop %v406
        %v409 = vmul.f32 %v406, %v408
        %vm410 = vcmp.eq.f32.partialorder %v406, inf
        %v411 = vsel %vm410, %v406, %v409
        %vm412 = vcmp.eq.f32.partialorder %v406, 0.0
        %v413 = vand.u32 %v406, 2147483648
        %v414 = vsel %vm412, %v413, %v411
        %v415 = vrsqrt.pop %v407
        %v416 = vmul.f32 %v407, %v415
        %vm417 = vcmp.eq.f32.partialorder %v407, inf
        %v418 = vsel %vm417, %v407, %v416
        %vm419 = vcmp.eq.f32.partialorder %v407, 0.0
        %v420 = vand.u32 %v407, 2147483648
        %v421 = vsel %vm419, %v420, %v418
        %v422 = vadd.f32 %v388, %v414
        %v423 = vadd.f32 %v395, %v421
        %v424 = vadd.f32 %v372, %v397
        %v425 = vadd.f32 %v373, %v398
        %v426 = vadd.f32 %v374, %v400
        %v427 = vadd.f32 %v375, %v401
        %s428 = scalar_lea.vmem %s309, 32 [#allocation2]
        %v429 = vld [vmem:[%s428] sm:$0xff]
        %v430 = vld [vmem:[%s428 + $0x8] sm:$0xff]
        %s431 = scalar_lea.vmem %s316, 32 [#allocation3]
        %v432 = vld [vmem:[%s431] sm:$0xff]
        %v433 = vld [vmem:[%s431 + $0x8] sm:$0xff]
        %v434 = vmul.f32 %v429, %v429
        %v435 = vmul.f32 %v430, %v430
        %v436 = vmul.f32 %v432, %v432
        %v437 = vmul.f32 %v433, %v433
        %v438 = vadd.f32 %v434, %v436
        %v439 = vadd.f32 %v435, %v437
        %v440 = vrsqrt.pop %v438
        %v441 = vmul.f32 %v438, %v440
        %vm442 = vcmp.eq.f32.partialorder %v438, inf
        %v443 = vsel %vm442, %v438, %v441
        %vm444 = vcmp.eq.f32.partialorder %v438, 0.0
        %v445 = vand.u32 %v438, 2147483648
        %v446 = vsel %vm444, %v445, %v443
        %v447 = vrsqrt.pop %v439
        %v448 = vmul.f32 %v439, %v447
        %vm449 = vcmp.eq.f32.partialorder %v439, inf
        %v450 = vsel %vm449, %v439, %v448
        %vm451 = vcmp.eq.f32.partialorder %v439, 0.0
        %v452 = vand.u32 %v439, 2147483648
        %v453 = vsel %vm451, %v452, %v450
        %v454 = vadd.f32 %v422, %v446
        %v455 = vadd.f32 %v423, %v453
        %v456 = vadd.f32 %v424, %v429
        %v457 = vadd.f32 %v425, %v430
        %v458 = vadd.f32 %v426, %v432
        %v459 = vadd.f32 %v427, %v433
        %s460 = scalar_lea.vmem %s309, 48 [#allocation2]
        %v461 = vld [vmem:[%s460] sm:$0xff]
        %v462 = vld [vmem:[%s460 + $0x8] sm:$0xff]
        %s463 = scalar_lea.vmem %s316, 48 [#allocation3]
        %v464 = vld [vmem:[%s463] sm:$0xff]
        %v465 = vld [vmem:[%s463 + $0x8] sm:$0xff]
        %v466 = vmul.f32 %v461, %v461
        %v467 = vmul.f32 %v462, %v462
        %v468 = vmul.f32 %v464, %v464
        %v469 = vmul.f32 %v465, %v465
        %v470 = vadd.f32 %v466, %v468
        %v471 = vadd.f32 %v467, %v469
        %v472 = vrsqrt.pop %v470
        %v473 = vmul.f32 %v470, %v472
        %vm474 = vcmp.eq.f32.partialorder %v470, inf
        %v475 = vsel %vm474, %v470, %v473
        %vm476 = vcmp.eq.f32.partialorder %v470, 0.0
        %v477 = vand.u32 %v470, 2147483648
        %v478 = vsel %vm476, %v477, %v475
        %v479 = vrsqrt.pop %v471
        %v480 = vmul.f32 %v471, %v479
        %vm481 = vcmp.eq.f32.partialorder %v471, inf
        %v482 = vsel %vm481, %v471, %v480
        %vm483 = vcmp.eq.f32.partialorder %v471, 0.0
        %v484 = vand.u32 %v471, 2147483648
        %v485 = vsel %vm483, %v484, %v482
        %v486 = vadd.f32 %v454, %v478
        %v487 = vadd.f32 %v455, %v485
        %v488 = vadd.f32 %v456, %v461
        %v489 = vadd.f32 %v457, %v462
        %v490 = vadd.f32 %v458, %v464
        %v491 = vadd.f32 %v459, %v465
        %v492 = vmul.f32 %v488, %v488
        %v493 = vmul.f32 %v489, %v489
        %v494 = vmul.f32 %v490, %v490
        %v495 = vmul.f32 %v491, %v491
        %v496 = vadd.f32 %v492, %v494
        %v497 = vadd.f32 %v493, %v495
        %v498 = vrsqrt.pop %v496
        %v499 = vmul.f32 %v496, %v498
        %vm500 = vcmp.eq.f32.partialorder %v496, inf
        %v501 = vsel %vm500, %v496, %v499
        %vm502 = vcmp.eq.f32.partialorder %v496, 0.0
        %v503 = vand.u32 %v496, 2147483648
        %v504 = vsel %vm502, %v503, %v501
        %v505 = vrsqrt.pop %v497
        %v506 = vmul.f32 %v497, %v505
        %vm507 = vcmp.eq.f32.partialorder %v497, inf
        %v508 = vsel %vm507, %v497, %v506
        %vm509 = vcmp.eq.f32.partialorder %v497, 0.0
        %v510 = vand.u32 %v497, 2147483648
        %v511 = vsel %vm509, %v510, %v508
        %v512 = vadd.f32 %v504, 0.0001
        %v513 = vadd.f32 %v511, 0.0001
        %v514 = vrcp.pop %v512
        %v515 = vrcp.pop %v513
        %v516 = vmul.f32 %v488, %v514
        %v517 = vmul.f32 %v489, %v515
        %v518 = vmul.f32 %v490, %v514
        %v519 = vmul.f32 %v491, %v515
        %v520 = vmul.f32 %v372, %v516
        %v521 = vmul.f32 %v373, %v517
        %v522 = vadd.f32 %v520, 0.0
        %v523 = vadd.f32 %v521, 0.0
        %v524 = vmul.f32 %v374, %v518
        %v525 = vmul.f32 %v375, %v519
        %v526 = vadd.f32 %v522, %v524
        %v527 = vadd.f32 %v523, %v525
        %v528 = vmul.f32 %v372, %v518
        %v529 = vmul.f32 %v373, %v519
        %v530 = vmul.f32 %v374, %v516
        %v531 = vmul.f32 %v375, %v517
        %v532 = vsub.f32 %v528, %v530
        %v533 = vsub.f32 %v529, %v531
        %v534 = vand.u32 2147483647, %v532
        %v535 = vand.u32 2147483647, %v533
        %v536 = vsub.f32 %v526, %v534
        %v537 = vsub.f32 %v527, %v535
        %v538 = vmul.f32 %v397, %v516
        %v539 = vmul.f32 %v398, %v517
        %v540 = vadd.f32 %v536, %v538
        %v541 = vadd.f32 %v537, %v539
        %v542 = vmul.f32 %v400, %v518
        %v543 = vmul.f32 %v401, %v519
        %v544 = vadd.f32 %v540, %v542
        %v545 = vadd.f32 %v541, %v543
        %v546 = vmul.f32 %v397, %v518
        %v547 = vmul.f32 %v398, %v519
        %v548 = vmul.f32 %v400, %v516
        %v549 = vmul.f32 %v401, %v517
        %v550 = vsub.f32 %v546, %v548
        %v551 = vsub.f32 %v547, %v549
        %v552 = vand.u32 2147483647, %v550
        %v553 = vand.u32 2147483647, %v551
        %v554 = vsub.f32 %v544, %v552
        %v555 = vsub.f32 %v545, %v553
        %v556 = vmul.f32 %v429, %v516
        %v557 = vmul.f32 %v430, %v517
        %v558 = vadd.f32 %v554, %v556
        %v559 = vadd.f32 %v555, %v557
        %v560 = vmul.f32 %v432, %v518
        %v561 = vmul.f32 %v433, %v519
        %v562 = vadd.f32 %v558, %v560
        %v563 = vadd.f32 %v559, %v561
        %v564 = vmul.f32 %v429, %v518
        %v565 = vmul.f32 %v430, %v519
        %v566 = vmul.f32 %v432, %v516
        %v567 = vmul.f32 %v433, %v517
        %v568 = vsub.f32 %v564, %v566
        %v569 = vsub.f32 %v565, %v567
        %v570 = vand.u32 2147483647, %v568
        %v571 = vand.u32 2147483647, %v569
        %v572 = vsub.f32 %v562, %v570
        %v573 = vsub.f32 %v563, %v571
        %v574 = vmul.f32 %v461, %v516
        %v575 = vmul.f32 %v462, %v517
        %v576 = vadd.f32 %v572, %v574
        %v577 = vadd.f32 %v573, %v575
        %v578 = vmul.f32 %v464, %v518
        %v579 = vmul.f32 %v465, %v519
        %v580 = vadd.f32 %v576, %v578
        %v581 = vadd.f32 %v577, %v579
        %v582 = vmul.f32 %v461, %v518
        %v583 = vmul.f32 %v462, %v519
        %v584 = vmul.f32 %v464, %v516
        %v585 = vmul.f32 %v465, %v517
        %v586 = vsub.f32 %v582, %v584
        %v587 = vsub.f32 %v583, %v585
        %v588 = vand.u32 2147483647, %v586
        %v589 = vand.u32 2147483647, %v587
        %v590 = vsub.f32 %v580, %v588
        %v591 = vsub.f32 %v581, %v589
        %vm592 = vcmask 130048
        %593 = vst.msk [vmem:[%s362] sm:$0xff] %vm592, %v486
        %594 = vst.msk [vmem:[%s362 + $0x8] sm:$0xff] %vm592, %v487
        %595 = vst.msk [vmem:[%s371] sm:$0xff] %vm592, %v590
        %596 = vst.msk [vmem:[%s371 + $0x8] sm:$0xff] %vm592, %v591
        %p597 = scmp.lt.s32.totalorder %s19, 3
        %s598 = scalar_select %p597, %s19, 3
        %p599 = scmp.lt.s32.totalorder %s20, 3
        %s600 = scalar_select %p599, %s20, 3
        %s601 = smul.addr %s600, 2
        %s602 = smul.addr %s598, 8
        %s603 = sadd.s32 %s601, %s602
        %s604 = smul.addr %s603, 8
        %s605 = scalar_lea.vmem %s2, %s604
        %p606 = scmp.lt.s32.totalorder %s19, 3
        %s607 = scalar_select %p606, %s19, 3
        %p608 = scmp.lt.s32.totalorder %s20, 3
        %s609 = scalar_select %p608, %s20, 3
        %s610 = smul.addr %s609, 2
        %s611 = smul.addr %s607, 8
        %s612 = sadd.s32 %s610, %s611
        %s613 = smul.addr %s612, 8
        %s614 = scalar_lea.vmem %s3, %s613
        // Predicated region
        $region105: #{fsim.5} parent=95 // pred_check
          %p615 = pneg %p103
        $region106: #{fsim.5} parent=95 // pred_check_branch
          %617 = sbr.rel (%p615) target = $region108
        $region107: #{fsim.5} parent=95 // pred_region
          _
        $region108: #{fsim.5} parent=95 // pred_fallthru
          _
        // Predicated region
        $region109: #{fsim.5} parent=95 // pred_check
          %p618 = pneg %p131
        $region110: #{fsim.5} parent=95 // pred_check_branch
          %620 = sbr.rel (%p618) target = $region112
        $region111: #{fsim.5} parent=95 // pred_region
          _
        $region112: #{fsim.5} parent=95 // pred_fallthru
          _
      $region96: #{fsim.5} parent=5 // pred_fallthru
        _
      %p621 = scmp.le.s32.totalorder 2, %s10
      // Predicated region
      $region113: #{fsim.5} parent=5 // pred_check
        %p622 = pneg %p621
      $region114: #{fsim.5} parent=5 // pred_check_branch
        %624 = sbr.rel (%p622) target = $region116
      $region115: #{fsim.5} parent=5 // pred_region
        %s625 = ssub.s32 %s10, 2
        // Predicated region
        $region117: #{fsim.5} parent=115 // pred_check
          %p626 = pneg %p109
        $region118: #{fsim.5} parent=115 // pred_check_branch
          %628 = sbr.rel (%p626) target = $region120
        $region119: #{fsim.5} parent=115 // pred_region
          %p629 = scmp.lt.s32.totalorder %s21, 3
          %s630 = scalar_select %p629, %s21, 3
          %p631 = scmp.lt.s32.totalorder %s22, 3
          %s632 = scalar_select %p631, %s22, 3
          %s633 = smul.addr %s632, 2
          %s634 = smul.addr %s630, 8
          %s635 = sadd.s32 %s633, %s634
          %s636 = smul.addr %s635, 8
          %s637 = scalar_lea.vmem %s2, %s636
        $region120: #{fsim.5} parent=115 // pred_fallthru
          _
        // Predicated region
        $region121: #{fsim.5} parent=115 // pred_check
          %p638 = pneg %p137
        $region122: #{fsim.5} parent=115 // pred_check_branch
          %640 = sbr.rel (%p638) target = $region124
        $region123: #{fsim.5} parent=115 // pred_region
          %p641 = scmp.lt.s32.totalorder %s21, 3
          %s642 = scalar_select %p641, %s21, 3
          %p643 = scmp.lt.s32.totalorder %s22, 3
          %s644 = scalar_select %p643, %s22, 3
          %s645 = smul.addr %s644, 2
          %s646 = smul.addr %s642, 8
          %s647 = sadd.s32 %s645, %s646
          %s648 = smul.addr %s647, 8
          %s649 = scalar_lea.vmem %s3, %s648
        $region124: #{fsim.5} parent=115 // pred_fallthru
          _
      $region116: #{fsim.5} parent=5 // pred_fallthru
        _
    $region6: #{fsim.5} parent=1 // loop_footer
      %s14 = sadd.s32 1, %s10
    $region7: #{fsim.5} parent=1 // loop_footer_branch
      %9 = sbr.rel target = $region3
    $region8: #{fsim.5} parent=1 // loop_exit
      _

// kernel: div.61
$region0: #{div.61}
  #allocation0 [shape = 's32[1]{0}', space=sflag, size = 0x4, scoped, tag = 'scoped memory for div.61']
  %s0 = inlined_call_operand.vmem [shape: f32[4,16,16], index: 0, kind: input, shape index: {}]
  %s1 = inlined_call_operand.vmem [shape: f32[4,16,16], index: 1, kind: input, shape index: {}]
  %s2 = inlined_call_operand.vmem [shape: f32[4,16,16], index: 2, kind: output, shape index: {}]
  %v3 = vld [vmem:[%s0] sm:$0xff]
  %v4 = vld [vmem:[%s1] sm:$0xff]
  %5 = xla_tuple %v3, %v4
  %6 = xla_tuple %5
  %v7 = vrcp.pop %v4
  %v8 = vmul.f32 %v3, %v7
  %9 = xla_tuple %v8
  %10 = vst [vmem:[%s2] sm:$0xff] %v8
  %s11 = scalar_lea.vmem %s0, 16
  %v12 = vld [vmem:[%s11] sm:$0xff]
  %s13 = scalar_lea.vmem %s1, 16
  %v14 = vld [vmem:[%s13] sm:$0xff]
  %15 = xla_tuple %v12, %v14
  %16 = xla_tuple %15
  %v17 = vrcp.pop %v14
  %v18 = vmul.f32 %v12, %v17
  %19 = xla_tuple %v18
  %s20 = scalar_lea.vmem %s2, 16
  %21 = vst [vmem:[%s20] sm:$0xff] %v18
  %s22 = scalar_lea.vmem %s0, 32
  %v23 = vld [vmem:[%s22] sm:$0xff]
  %s24 = scalar_lea.vmem %s1, 32
  %v25 = vld [vmem:[%s24] sm:$0xff]
  %26 = xla_tuple %v23, %v25
  %27 = xla_tuple %26
  %v28 = vrcp.pop %v25
  %v29 = vmul.f32 %v23, %v28
  %30 = xla_tuple %v29
  %s31 = scalar_lea.vmem %s2, 32
  %32 = vst [vmem:[%s31] sm:$0xff] %v29
  %s33 = scalar_lea.vmem %s0, 48
  %v34 = vld [vmem:[%s33] sm:$0xff]
  %s35 = scalar_lea.vmem %s1, 48
  %v36 = vld [vmem:[%s35] sm:$0xff]
  %37 = xla_tuple %v34, %v36
  %38 = xla_tuple %37
  %v39 = vrcp.pop %v36
  %v40 = vmul.f32 %v34, %v39
  %41 = xla_tuple %v40
  %s42 = scalar_lea.vmem %s2, 48
  %43 = vst [vmem:[%s42] sm:$0xff] %v40
  %s44 = scalar_lea.vmem %s0, 8
  %v45 = vld [vmem:[%s44] sm:$0xff]
  %s46 = scalar_lea.vmem %s1, 8
  %v47 = vld [vmem:[%s46] sm:$0xff]
  %48 = xla_tuple %v45, %v47
  %49 = xla_tuple %48
  %v50 = vrcp.pop %v47
  %v51 = vmul.f32 %v45, %v50
  %52 = xla_tuple %v51
  %s53 = scalar_lea.vmem %s2, 8
  %54 = vst [vmem:[%s53] sm:$0xff] %v51
  %s55 = scalar_lea.vmem %s0, 24
  %v56 = vld [vmem:[%s55] sm:$0xff]
  %s57 = scalar_lea.vmem %s1, 24
  %v58 = vld [vmem:[%s57] sm:$0xff]
  %59 = xla_tuple %v56, %v58
  %60 = xla_tuple %59
  %v61 = vrcp.pop %v58
  %v62 = vmul.f32 %v56, %v61
  %63 = xla_tuple %v62
  %s64 = scalar_lea.vmem %s2, 24
  %65 = vst [vmem:[%s64] sm:$0xff] %v62
  %s66 = scalar_lea.vmem %s0, 40
  %v67 = vld [vmem:[%s66] sm:$0xff]
  %s68 = scalar_lea.vmem %s1, 40
  %v69 = vld [vmem:[%s68] sm:$0xff]
  %70 = xla_tuple %v67, %v69
  %71 = xla_tuple %70
  %v72 = vrcp.pop %v69
  %v73 = vmul.f32 %v67, %v72
  %74 = xla_tuple %v73
  %s75 = scalar_lea.vmem %s2, 40
  %76 = vst [vmem:[%s75] sm:$0xff] %v73
  %s77 = scalar_lea.vmem %s0, 56
  %v78 = vld [vmem:[%s77] sm:$0xff]
  %s79 = scalar_lea.vmem %s1, 56
  %v80 = vld [vmem:[%s79] sm:$0xff]
  %81 = xla_tuple %v78, %v80
  %82 = xla_tuple %81
  %v83 = vrcp.pop %v80
  %v84 = vmul.f32 %v78, %v83
  %85 = xla_tuple %v84
  %s86 = scalar_lea.vmem %s2, 56
  %87 = vst [vmem:[%s86] sm:$0xff] %v84

// kernel: fsim.7
$region0: #{fsim.7}
  #allocation0 [shape = 'u32[]', space=smem, size = 0x4, offset = 0x4, fixed_abs, tag = 'smem constant byte address 0x4 - core index']
  #allocation1 [shape = 'u32[144,128]{1,0:T(1,128)}', space=vmem, size = 0x12000, scoped, tag = 'internal scratch']
  %s0 = inlined_call_operand.vmem [shape: f32[2,2,128], index: 0, kind: input, shape index: {}]
  %s1 = inlined_call_operand.vmem [shape: f32[2,2,128], index: 1, kind: input, shape index: {}]
  %s2 = inlined_call_operand.vmem [shape: f32[2,2,128], index: 2, kind: input, shape index: {}]
  %s3 = inlined_call_operand.vmem [shape: f32[2,2,128], index: 3, kind: input, shape index: {}]
  %s4 = inlined_call_operand.vmem [shape: f32[2,1,128], index: 4, kind: output, shape index: {0}]
  %s5 = inlined_call_operand.vmem [shape: f32[2,1,128], index: 5, kind: output, shape index: {1}]
  %6 = xla_tuple %s4, %s5
  %s7 = sld [smem:[#allocation0]]
  $region57: #{fsim.7} parent=0
    _
  %s9 = ssub.s32 1, %s7
  %s10 = scalar_select 0, %s9, %s7
  loop: start=0, step=1, limit=4
  $region2: #{fsim.7} parent=0 // loop_pre_header
    _
  $region3: #{fsim.7} parent=0 // loop_header
    %s12 = sphi 0, %s16
    %p13 = scmp.ge.s32.totalorder %s12, 4
    %s22 = sphi 0, %s24
    %s25 = sphi 0, %s22
    %s26 = sphi 0, %s25
    %s42 = sphi 0, %s26
    %s48 = sphi 0, %s50
    %s51 = sphi 0, %s48
    %s52 = sphi 0, %s51
    %s68 = sphi 0, %s52
    %s74 = sphi 0, %s76
    %s77 = sphi 0, %s74
    %s78 = sphi 0, %s77
    %s94 = sphi 0, %s78
    %s100 = sphi 0, %s102
    %s103 = sphi 0, %s100
    %s104 = sphi 0, %s103
    %s120 = sphi 0, %s104
    %s126 = sphi 0, %s128
    %s129 = sphi 0, %s126
    %s130 = sphi 0, %s129
    %s146 = sphi 0, %s130
    %s152 = sphi 0, %s154
    %s155 = sphi 0, %s152
    %s156 = sphi 0, %s155
    %s172 = sphi 0, %s156
  $region4: #{fsim.7} parent=0 // loop_header_branch
    %15 = sbr.rel (%p13) target = $region8
  $region5: #{fsim.7} parent=0 // loop_body
    %s17 = ssub.s32 %s12, 1
    %s18 = ssub.s32 %s12, 2
    %s19 = sadd.s32 %s12, 1
    %s20 = ssub.s32 %s12, %s19
    %p21 = scmp.eq.s32.totalorder %s20, 0
    %s23 = sadd.s32 %s22, 1
    %s24 = scalar_select %p21, %s22, %s23
    %p27 = pneg %p21
    %p28 = scmp.eq.s32.totalorder %s12, 1
    %p29 = por %p27, %p28
    %p30 = scmp.ne.s32.totalorder %s22, %s25
    %p31 = scmp.eq.s32.totalorder %s12, 0
    %p32 = por %p30, %p31
    %p33 = scmp.ne.s32.totalorder %s22, %s25
    %p34 = scmp.eq.s32.totalorder %s17, 1
    %p35 = por %p33, %p34
    %p36 = scmp.ne.s32.totalorder %s25, %s26
    %p37 = scmp.eq.s32.totalorder %s17, 0
    %p38 = por %p36, %p37
    %p39 = scmp.ne.s32.totalorder %s25, %s26
    %p40 = scmp.eq.s32.totalorder %s18, 1
    %p41 = por %p39, %p40
    %p43 = scmp.ne.s32.totalorder %s26, %s42
    %p44 = scmp.eq.s32.totalorder %s18, 0
    %p45 = por %p43, %p44
    %s46 = ssub.s32 %s12, %s19
    %p47 = scmp.eq.s32.totalorder %s46, 0
    %s49 = sadd.s32 %s48, 1
    %s50 = scalar_select %p47, %s48, %s49
    %p53 = pneg %p47
    %p54 = scmp.eq.s32.totalorder %s12, 1
    %p55 = por %p53, %p54
    %p56 = scmp.ne.s32.totalorder %s48, %s51
    %p57 = scmp.eq.s32.totalorder %s12, 0
    %p58 = por %p56, %p57
    %p59 = scmp.ne.s32.totalorder %s48, %s51
    %p60 = scmp.eq.s32.totalorder %s17, 1
    %p61 = por %p59, %p60
    %p62 = scmp.ne.s32.totalorder %s51, %s52
    %p63 = scmp.eq.s32.totalorder %s17, 0
    %p64 = por %p62, %p63
    %p65 = scmp.ne.s32.totalorder %s51, %s52
    %p66 = scmp.eq.s32.totalorder %s18, 1
    %p67 = por %p65, %p66
    %p69 = scmp.ne.s32.totalorder %s52, %s68
    %p70 = scmp.eq.s32.totalorder %s18, 0
    %p71 = por %p69, %p70
    %s72 = ssub.s32 %s12, %s19
    %p73 = scmp.eq.s32.totalorder %s72, 0
    %s75 = sadd.s32 %s74, 1
    %s76 = scalar_select %p73, %s74, %s75
    %p79 = pneg %p73
    %p80 = scmp.eq.s32.totalorder %s12, 1
    %p81 = por %p79, %p80
    %p82 = scmp.ne.s32.totalorder %s74, %s77
    %p83 = scmp.eq.s32.totalorder %s12, 0
    %p84 = por %p82, %p83
    %p85 = scmp.ne.s32.totalorder %s74, %s77
    %p86 = scmp.eq.s32.totalorder %s17, 1
    %p87 = por %p85, %p86
    %p88 = scmp.ne.s32.totalorder %s77, %s78
    %p89 = scmp.eq.s32.totalorder %s17, 0
    %p90 = por %p88, %p89
    %p91 = scmp.ne.s32.totalorder %s77, %s78
    %p92 = scmp.eq.s32.totalorder %s18, 1
    %p93 = por %p91, %p92
    %p95 = scmp.ne.s32.totalorder %s78, %s94
    %p96 = scmp.eq.s32.totalorder %s18, 0
    %p97 = por %p95, %p96
    %s98 = ssub.s32 %s12, %s19
    %p99 = scmp.eq.s32.totalorder %s98, 0
    %s101 = sadd.s32 %s100, 1
    %s102 = scalar_select %p99, %s100, %s101
    %p105 = pneg %p99
    %p106 = scmp.eq.s32.totalorder %s12, 1
    %p107 = por %p105, %p106
    %p108 = scmp.ne.s32.totalorder %s100, %s103
    %p109 = scmp.eq.s32.totalorder %s12, 0
    %p110 = por %p108, %p109
    %p111 = scmp.ne.s32.totalorder %s100, %s103
    %p112 = scmp.eq.s32.totalorder %s17, 1
    %p113 = por %p111, %p112
    %p114 = scmp.ne.s32.totalorder %s103, %s104
    %p115 = scmp.eq.s32.totalorder %s17, 0
    %p116 = por %p114, %p115
    %p117 = scmp.ne.s32.totalorder %s103, %s104
    %p118 = scmp.eq.s32.totalorder %s18, 1
    %p119 = por %p117, %p118
    %p121 = scmp.ne.s32.totalorder %s104, %s120
    %p122 = scmp.eq.s32.totalorder %s18, 0
    %p123 = por %p121, %p122
    %s124 = ssub.s32 %s12, %s19
    %p125 = scmp.eq.s32.totalorder %s124, 0
    %s127 = sadd.s32 %s126, 1
    %s128 = scalar_select %p125, %s126, %s127
    %p131 = pneg %p125
    %p132 = scmp.eq.s32.totalorder %s12, 1
    %p133 = por %p131, %p132
    %p134 = scmp.ne.s32.totalorder %s126, %s129
    %p135 = scmp.eq.s32.totalorder %s12, 0
    %p136 = por %p134, %p135
    %p137 = scmp.ne.s32.totalorder %s126, %s129
    %p138 = scmp.eq.s32.totalorder %s17, 1
    %p139 = por %p137, %p138
    %p140 = scmp.ne.s32.totalorder %s129, %s130
    %p141 = scmp.eq.s32.totalorder %s17, 0
    %p142 = por %p140, %p141
    %p143 = scmp.ne.s32.totalorder %s129, %s130
    %p144 = scmp.eq.s32.totalorder %s18, 1
    %p145 = por %p143, %p144
    %p147 = scmp.ne.s32.totalorder %s130, %s146
    %p148 = scmp.eq.s32.totalorder %s18, 0
    %p149 = por %p147, %p148
    %s150 = ssub.s32 %s12, %s19
    %p151 = scmp.eq.s32.totalorder %s150, 0
    %s153 = sadd.s32 %s152, 1
    %s154 = scalar_select %p151, %s152, %s153
    %p157 = pneg %p151
    %p158 = scmp.eq.s32.totalorder %s12, 1
    %p159 = por %p157, %p158
    %p160 = scmp.ne.s32.totalorder %s152, %s155
    %p161 = scmp.eq.s32.totalorder %s12, 0
    %p162 = por %p160, %p161
    %p163 = scmp.ne.s32.totalorder %s152, %s155
    %p164 = scmp.eq.s32.totalorder %s17, 1
    %p165 = por %p163, %p164
    %p166 = scmp.ne.s32.totalorder %s155, %s156
    %p167 = scmp.eq.s32.totalorder %s17, 0
    %p168 = por %p166, %p167
    %p169 = scmp.ne.s32.totalorder %s155, %s156
    %p170 = scmp.eq.s32.totalorder %s18, 1
    %p171 = por %p169, %p170
    %p173 = scmp.ne.s32.totalorder %s156, %s172
    %p174 = scmp.eq.s32.totalorder %s18, 0
    %p175 = por %p173, %p174
    %p176 = scmp.le.s32.totalorder 1, %s12
    %p177 = scmp.lt.s32.totalorder %s12, 3
    %p178 = pnand %p176, %p177
    %p179 = pneg %p178
    // Predicated region
    $region9: #{fsim.7} parent=5 // pred_check
      _
    $region10: #{fsim.7} parent=5 // pred_check_branch
      %181 = sbr.rel (%p178) target = $region12
    $region11: #{fsim.7} parent=5 // pred_region
      %s182 = ssub.s32 %s12, 1
    $region12: #{fsim.7} parent=5 // pred_fallthru
      _
    %p183 = scmp.lt.s32.totalorder %s12, 2
    // Predicated region
    $region13: #{fsim.7} parent=5 // pred_check
      %p184 = pneg %p183
    $region14: #{fsim.7} parent=5 // pred_check_branch
      %186 = sbr.rel (%p184) target = $region16
    $region15: #{fsim.7} parent=5 // pred_region
      // Predicated region
      $region17: #{fsim.7} parent=15 // pred_check
        %p187 = pneg %p32
      $region18: #{fsim.7} parent=15 // pred_check_branch
        %189 = sbr.rel (%p187) target = $region20
      $region19: #{fsim.7} parent=15 // pred_region
        %p190 = scmp.lt.s32.totalorder %s12, 1
        %s191 = scalar_select %p190, %s12, 1
        %s192 = smul.addr %s191, 2
        %s193 = scalar_lea.vmem %s0, %s192
      $region20: #{fsim.7} parent=15 // pred_fallthru
        _
      // Predicated region
      $region21: #{fsim.7} parent=15 // pred_check
        %p194 = pneg %p58
      $region22: #{fsim.7} parent=15 // pred_check_branch
        %196 = sbr.rel (%p194) target = $region24
      $region23: #{fsim.7} parent=15 // pred_region
        %p197 = scmp.lt.s32.totalorder %s12, 1
        %s198 = scalar_select %p197, %s12, 1
        %s199 = smul.addr %s198, 2
        %s200 = scalar_lea.vmem %s1, %s199
      $region24: #{fsim.7} parent=15 // pred_fallthru
        _
      // Predicated region
      $region25: #{fsim.7} parent=15 // pred_check
        %p201 = pneg %p84
      $region26: #{fsim.7} parent=15 // pred_check_branch
        %203 = sbr.rel (%p201) target = $region28
      $region27: #{fsim.7} parent=15 // pred_region
        %p204 = scmp.lt.s32.totalorder %s12, 1
        %s205 = scalar_select %p204, %s12, 1
        %s206 = smul.addr %s205, 2
        %s207 = scalar_lea.vmem %s2, %s206
      $region28: #{fsim.7} parent=15 // pred_fallthru
        _
      // Predicated region
      $region29: #{fsim.7} parent=15 // pred_check
        %p208 = pneg %p110
      $region30: #{fsim.7} parent=15 // pred_check_branch
        %210 = sbr.rel (%p208) target = $region32
      $region31: #{fsim.7} parent=15 // pred_region
        %p211 = scmp.lt.s32.totalorder %s12, 1
        %s212 = scalar_select %p211, %s12, 1
        %s213 = smul.addr %s212, 2
        %s214 = scalar_lea.vmem %s3, %s213
      $region32: #{fsim.7} parent=15 // pred_fallthru
        _
    $region16: #{fsim.7} parent=5 // pred_fallthru
      _
    %p215 = scmp.le.s32.totalorder 1, %s12
    %p216 = scmp.lt.s32.totalorder %s12, 3
    %p217 = pnand %p215, %p216
    %p218 = pneg %p217
    // Predicated region
    $region33: #{fsim.7} parent=5 // pred_check
      _
    $region34: #{fsim.7} parent=5 // pred_check_branch
      %220 = sbr.rel (%p217) target = $region36
    $region35: #{fsim.7} parent=5 // pred_region
      %s221 = ssub.s32 %s12, 1
      %p222 = scmp.lt.s32.totalorder %s17, 1
      %s223 = scalar_select %p222, %s17, 1
      %s224 = smul.addr %s223, 2
      %s225 = scalar_lea.vmem %s0, %s224
      %p226 = pneg %p38
      %p227 = pneg %p35
      %p228 = scmp.lt.s32.totalorder %s17, 1
      %s229 = scalar_select %p228, %s17, 1
      %s230 = smul.addr %s229, 2
      %s231 = scalar_lea.vmem %s1, %s230
      %p232 = pneg %p64
      %p233 = pneg %p61
      %p234 = scmp.lt.s32.totalorder %s17, 1
      %s235 = scalar_select %p234, %s17, 1
      %s236 = smul.addr %s235, 2
      %s237 = scalar_lea.vmem %s2, %s236
      %p238 = pneg %p90
      %p239 = pneg %p87
      %p240 = scmp.lt.s32.totalorder %s17, 1
      %s241 = scalar_select %p240, %s17, 1
      %s242 = smul.addr %s241, 2
      %s243 = scalar_lea.vmem %s3, %s242
      %p244 = pneg %p116
      %p245 = pneg %p113
      %p246 = pneg %p142
      %p247 = pneg %p139
      %p248 = scmp.lt.s32.totalorder %s17, 1
      %s249 = scalar_select %p248, %s17, 1
      %s250 = scalar_lea.vmem %s4, %s249
      %p251 = pneg %p168
      %p252 = pneg %p165
      %p253 = scmp.lt.s32.totalorder %s17, 1
      %s254 = scalar_select %p253, %s17, 1
      %s255 = scalar_lea.vmem %s5, %s254
      %p256 = scmp.lt.s32.totalorder %s17, 1
      %s257 = scalar_select %p256, %s17, 1
      %s258 = smul.addr %s257, 2
      %s259 = scalar_lea.vmem %s0, %s258
      %p260 = scmp.lt.s32.totalorder %s17, 1
      %s261 = scalar_select %p260, %s17, 1
      %s262 = smul.addr %s261, 2
      %s263 = scalar_lea.vmem %s1, %s262
      %p264 = scmp.lt.s32.totalorder %s17, 1
      %s265 = scalar_select %p264, %s17, 1
      %s266 = smul.addr %s265, 2
      %s267 = scalar_lea.vmem %s2, %s266
      %p268 = scmp.lt.s32.totalorder %s17, 1
      %s269 = scalar_select %p268, %s17, 1
      %s270 = smul.addr %s269, 2
      %s271 = scalar_lea.vmem %s3, %s270
      %p272 = scmp.lt.s32.totalorder %s17, 1
      %s273 = scalar_select %p272, %s17, 1
      %s274 = scalar_lea.vmem %s4, %s273
      %p275 = scmp.lt.s32.totalorder %s17, 1
      %s276 = scalar_select %p275, %s17, 1
      %s277 = scalar_lea.vmem %s5, %s276
      %v278 = vld [vmem:[%s259] sm:$0x3]
      %v279 = vld [vmem:[%s263] sm:$0x3]
      %v280 = vld [vmem:[%s267] sm:$0x3]
      %v281 = vld [vmem:[%s271] sm:$0x3]
      %v282 = vmul.f32 %v278, 2.0
      %v283 = vmul.f32 %v282, %v279
      %v284 = vadd.f32 %v283, 0.85
      %v285 = vmul.f32 %v278, %v278
      %v286 = vmul.f32 %v279, %v279
      %v287 = vadd.f32 %v285, %v286
      %v288 = vadd.f32 %v287, 0.85
      %v289 = vrcp.pop %v288
      %v290 = vmul.f32 %v284, %v289
      %v291 = vmul.f32 %v280, 2.0
      %v292 = vmul.f32 %v291, %v281
      %v293 = vadd.f32 %v292, 160.0
      %v294 = vmul.f32 %v280, %v280
      %v295 = vmul.f32 %v281, %v281
      %v296 = vadd.f32 %v294, %v295
      %v297 = vadd.f32 %v296, 160.0
      %v298 = vrcp.pop %v297
      %v299 = vmul.f32 %v293, %v298
      %vm300 = vcmp.gt.f32.partialorder %v278, %v279
      %v301 = vsel %vm300, %v278, %v279
      %v302 = vmul.f32 %v299, %v290
      %v303 = vmul.f32 %v302, %v301
      %vm304 = vcmask 1041408
      %v305 = vsel %vm304, %v303, 0.0
      %306 = vadd.xlane.f32.xlu0 %v305
      %v307 = vpop.xlane.xlu0 %306
      %v308 = vrot.slane %v307, 4
      %v309 = vadd.f32 %v307, %v308
      %v310 = vrot.slane %v309, 2
      %v311 = vadd.f32 %v309, %v310
      %v312 = vrot.slane %v311, 1
      %v313 = vadd.f32 %v311, %v312
      %s314 = vtos %v313
      %v315 = vstv %s314
      %316 = vst [vmem:[%s274] sm:$0x1] %v315
      %v317 = vsel %vm304, %v301, 0.0
      %318 = vadd.xlane.f32.xlu0 %v317
      %v319 = vpop.xlane.xlu0 %318
      %v320 = vrot.slane %v319, 4
      %v321 = vadd.f32 %v319, %v320
      %v322 = vrot.slane %v321, 2
      %v323 = vadd.f32 %v321, %v322
      %v324 = vrot.slane %v323, 1
      %v325 = vadd.f32 %v323, %v324
      %s326 = vtos %v325
      %v327 = vstv %s326
      %328 = vst [vmem:[%s277] sm:$0x1] %v327
      %p329 = scmp.lt.s32.totalorder %s17, 1
      %s330 = scalar_select %p329, %s17, 1
      %s331 = scalar_lea.vmem %s4, %s330
      %p332 = scmp.lt.s32.totalorder %s17, 1
      %s333 = scalar_select %p332, %s17, 1
      %s334 = scalar_lea.vmem %s5, %s333
      // Predicated region
      $region37: #{fsim.7} parent=35 // pred_check
        %p335 = pneg %p139
      $region38: #{fsim.7} parent=35 // pred_check_branch
        %337 = sbr.rel (%p335) target = $region40
      $region39: #{fsim.7} parent=35 // pred_region
        _
      $region40: #{fsim.7} parent=35 // pred_fallthru
        _
      // Predicated region
      $region41: #{fsim.7} parent=35 // pred_check
        %p338 = pneg %p165
      $region42: #{fsim.7} parent=35 // pred_check_branch
        %340 = sbr.rel (%p338) target = $region44
      $region43: #{fsim.7} parent=35 // pred_region
        _
      $region44: #{fsim.7} parent=35 // pred_fallthru
        _
    $region36: #{fsim.7} parent=5 // pred_fallthru
      _
    %p341 = scmp.le.s32.totalorder 2, %s12
    // Predicated region
    $region45: #{fsim.7} parent=5 // pred_check
      %p342 = pneg %p341
    $region46: #{fsim.7} parent=5 // pred_check_branch
      %344 = sbr.rel (%p342) target = $region48
    $region47: #{fsim.7} parent=5 // pred_region
      %s345 = ssub.s32 %s12, 2
      // Predicated region
      $region49: #{fsim.7} parent=47 // pred_check
        %p346 = pneg %p145
      $region50: #{fsim.7} parent=47 // pred_check_branch
        %348 = sbr.rel (%p346) target = $region52
      $region51: #{fsim.7} parent=47 // pred_region
        %p349 = scmp.lt.s32.totalorder %s18, 1
        %s350 = scalar_select %p349, %s18, 1
        %s351 = scalar_lea.vmem %s4, %s350
      $region52: #{fsim.7} parent=47 // pred_fallthru
        _
      // Predicated region
      $region53: #{fsim.7} parent=47 // pred_check
        %p352 = pneg %p171
      $region54: #{fsim.7} parent=47 // pred_check_branch
        %354 = sbr.rel (%p352) target = $region56
      $region55: #{fsim.7} parent=47 // pred_region
        %p355 = scmp.lt.s32.totalorder %s18, 1
        %s356 = scalar_select %p355, %s18, 1
        %s357 = scalar_lea.vmem %s5, %s356
      $region56: #{fsim.7} parent=47 // pred_fallthru
        _
    $region48: #{fsim.7} parent=5 // pred_fallthru
      _
  $region6: #{fsim.7} parent=0 // loop_footer
    %s16 = sadd.s32 1, %s12
  $region7: #{fsim.7} parent=0 // loop_footer_branch
    %11 = sbr.rel target = $region3
  $region8: #{fsim.7} parent=0 // loop_exit
    _

</llo_original>
